<compile_context>
chip_gen: v7x
topology: tpu7x:2x2x1
jax: 0.10.0
libtpu: 0.0.40
codegen_flags: <defaults>
</compile_context>

<pallas_src>
import jax
import jax.numpy as jnp
from jax.experimental import pallas as pl
from jax.experimental.pallas import tpu as pltpu


# --------------------------------------------------------------------------
# Kernel: one grid step == one timestep of the recurrent forward pass.
# --------------------------------------------------------------------------
def adhoc_q_kernel(obs_ref, nbr_ref, h0_ref,
                   w_enc_ref, b_enc_ref,
                   w_gru_ref, b_gru_ref,
                   w_nbr_ref, b_nbr_ref,
                   w_agt_ref, b_agt_ref,
                   w_out_ref, b_out_ref,
                   logits_ref, h_out_ref,
                   xh_ref, rep_ref):
    f32 = jnp.float32
    B, H = h_out_ref.shape
    NB = nbr_ref.shape[0]          # = N * B (neighbor-major rows)
    N = NB // B
    t = pl.program_id(0)

    # h_out block index is constant over T -> stays resident in VMEM and acts
    # as the recurrent carry.  Initialize it from h0 on the first step.
    @pl.when(t == 0)
    def _():
        h_out_ref[...] = h0_ref[...]

    h = h_out_ref[...]                                             # (B, H)

    # ---- f_enc: Linear + ReLU -------------------------------------------
    x = jnp.dot(obs_ref[...], w_enc_ref[...],
                preferred_element_type=f32) + b_enc_ref[...]
    x = jnp.maximum(x, 0.0)                                        # (B, H)

    # ---- rnn: GRU cell, single fused gate matmul on [x | h] --------------
    # gate columns: [r | z | n_in | n_hid], each H wide (4H lanes total)
    xh_ref[:, :H] = x
    xh_ref[:, H:] = h
    gates = (jnp.dot(xh_ref[...], w_gru_ref[...],
                     preferred_element_type=f32) + b_gru_ref[...])  # (B, 4H)

    rz = jax.nn.sigmoid(gates[:, :2 * H])    # one EUP pass over r and z
    r = rz[:, :H]
    z = rz[:, H:]
    n = jnp.tanh(gates[:, 2 * H:3 * H] + r * gates[:, 3 * H:])
    h_new = (1.0 - z) * n + z * h                                   # (B, H)
    h_out_ref[...] = h_new

    # ---- f_out: NeighborSelector (all 2D, neighbor-major N*B rows) -------
    agent_proj = (jnp.dot(h_new, w_agt_ref[...],
                          preferred_element_type=f32) + b_agt_ref[...])  # (B, H)
    # Replicate the agent projection over neighbors with N static-slice VMEM
    # stores (rows j*B:(j+1)*B hold batch rows 0..B-1) — no rep matmul, no
    # value-level reshape/concat.
    for j in range(N):
        rep_ref[j * B:(j + 1) * B, :] = agent_proj

    nbr_pre = (jnp.dot(nbr_ref[...], w_nbr_ref[...],
                       preferred_element_type=f32) + b_nbr_ref[...])     # (NB, H)
    e = jnp.tanh(nbr_pre + rep_ref[...])                                 # (NB, H)
    # Lane-dense (128-wide, zero-padded) logits store.
    logits_ref[...] = (jnp.dot(e, w_out_ref[...],
                               preferred_element_type=f32) + b_out_ref[...])


# --------------------------------------------------------------------------
# One-time weight packing (gate fusion, output lane padding).
# --------------------------------------------------------------------------
def pack_params(params):
    H = params["w_agt"].shape[0]
    P = params["w_out"].shape[-1]
    P_PAD = 128                                    # lane-dense output width

    w_ih, w_hh = params["w_ih"], params["w_hh"]    # (3, H, H), gate order [r, z, n]
    b_ih, b_hh = params["b_ih"], params["b_hh"]    # (3, 1, H)
    zH = jnp.zeros((H, H), jnp.float32)
    # rows [x ; h], columns [r | z | n_in | n_hid]
    w_gru = jnp.concatenate(
        [jnp.concatenate([w_ih[0], w_ih[1], w_ih[2], zH], axis=1),
         jnp.concatenate([w_hh[0], w_hh[1], zH, w_hh[2]], axis=1)], axis=0)  # (2H, 4H)
    b_gru = jnp.concatenate([b_ih[0] + b_hh[0], b_ih[1] + b_hh[1],
                             b_ih[2], b_hh[2]], axis=1)                      # (1, 4H)

    w_out_pad = jnp.zeros((H, P_PAD), jnp.float32).at[:, :P].set(params["w_out"])
    b_out_pad = jnp.zeros((1, P_PAD), jnp.float32).at[:, :P].set(params["b_out"])

    return {
        "w_enc": params["w_enc"], "b_enc": params["b_enc"],
        "w_gru": w_gru, "b_gru": b_gru,
        "w_nbr": params["w_nbr"], "b_nbr": params["b_nbr"],
        "w_agt": params["w_agt"], "b_agt": params["b_agt"],
        "w_out": w_out_pad, "b_out": b_out_pad,
        "n_pow": P,
    }


# --------------------------------------------------------------------------
# Sequence wrapper: runs T recurrent steps inside ONE pallas_call.
# --------------------------------------------------------------------------
def adhoc_relational_q_seq(obs_seq, nbr_seq, h0, packed):
    """obs_seq (T,B,D_obs), nbr_seq (T,B,N,Dn), h0 (B,H) ->
       (logits (T,B,N*P), h_T (B,H))."""
    T, B, D_obs = obs_seq.shape
    _, _, N, Dn = nbr_seq.shape
    H = h0.shape[-1]
    P = packed["n_pow"]
    P_PAD = packed["w_out"].shape[-1]
    NB = N * B

    # Neighbor-major flatten: row index = j*B + b (so the in-kernel agent
    # replication is a contiguous block copy per neighbor index).
    nbr_nb = nbr_seq.transpose(0, 2, 1, 3).reshape(T, NB, Dn)

    weight_args = (packed["w_enc"], packed["b_enc"],
                   packed["w_gru"], packed["b_gru"],
                   packed["w_nbr"], packed["b_nbr"],
                   packed["w_agt"], packed["b_agt"],
                   packed["w_out"], packed["b_out"])

    # Weights: full-array blocks whose index never changes over the T grid ->
    # DMA'd into VMEM once and kept resident for all steps.
    weight_specs = [pl.BlockSpec(w.shape, lambda t: (0, 0)) for w in weight_args]

    in_specs = [
        pl.BlockSpec((pl.Squeezed(), B, D_obs), lambda t: (t, 0, 0)),   # obs[t]
        pl.BlockSpec((pl.Squeezed(), NB, Dn), lambda t: (t, 0, 0)),     # nbr[t]
        pl.BlockSpec((B, H), lambda t: (0, 0)),                         # h0 (once)
    ] + weight_specs

    out_specs = (
        pl.BlockSpec((pl.Squeezed(), NB, P_PAD), lambda t: (t, 0, 0)),  # logits[t]
        pl.BlockSpec((B, H), lambda t: (0, 0)),                         # carried h
    )

    flops = 2 * T * (B * D_obs * H          # encoder
                     + B * (2 * H) * (4 * H)  # fused GRU gate matmul
                     + B * H * H            # agent projection
                     + NB * Dn * H          # neighbor projection
                     + NB * H * P_PAD)      # padded output logits
    transcendentals = T * (B * 3 * H + NB * H)
    weight_bytes = 4 * sum(int(w.size) for w in weight_args)
    bytes_accessed = weight_bytes + 4 * (int(obs_seq.size) + int(nbr_nb.size)
                                         + T * NB * P_PAD + 2 * B * H)

    logits_pad, h_new = pl.pallas_call(
        adhoc_q_kernel,
        out_shape=(jax.ShapeDtypeStruct((T, NB, P_PAD), jnp.float32),
                   jax.ShapeDtypeStruct((B, H), jnp.float32)),
        grid=(T,),
        in_specs=in_specs,
        out_specs=out_specs,
        scratch_shapes=[pltpu.VMEM((B, 2 * H), jnp.float32),    # [x | h] staging
                        pltpu.VMEM((NB, H), jnp.float32)],      # agent replication
        compiler_params=pltpu.CompilerParams(
            dimension_semantics=("arbitrary",)),   # recurrent carry over T
        cost_estimate=pl.CostEstimate(flops=flops,
                                      transcendentals=transcendentals,
                                      bytes_accessed=bytes_accessed),
    )(obs_seq, nbr_nb, h0, *weight_args)

    # Un-permute neighbor-major rows back to (T, B, N*P) and drop lane padding.
    logits = (logits_pad[:, :, :P]
              .reshape(T, N, B, P)
              .transpose(0, 2, 1, 3)
              .reshape(T, B, N * P))
    return logits, h_new


def adhoc_relational_q(obs, nbr_feat, h, packed):
    """Single-step forward matching the module signature."""
    logits, h_new = adhoc_relational_q_seq(obs[None], nbr_feat[None], h, packed)
    return logits[0], h_new


# --------------------------------------------------------------------------
# Pure-JAX references.
# --------------------------------------------------------------------------
def reference_forward(obs, nbr_feat, h, p):
    x = jax.nn.relu(obs @ p["w_enc"] + p["b_enc"])
    gi = [x @ p["w_ih"][k] + p["b_ih"][k] for k in range(3)]
    gh = [h @ p["w_hh"][k] + p["b_hh"][k] for k in range(3)]
    r = jax.nn.sigmoid(gi[0] + gh[0])
    z = jax.nn.sigmoid(gi[1] + gh[1])
    n = jnp.tanh(gi[2] + r * gh[2])
    h_new = (1.0 - z) * n + z * h
    agent_proj = h_new @ p["w_agt"] + p["b_agt"]
    nbr_proj = jnp.einsum("bnd,dh->bnh", nbr_feat, p["w_nbr"]) + p["b_nbr"]
    e = jnp.tanh(nbr_proj + agent_proj[:, None, :])
    logits = jnp.einsum("bnh,hp->bnp", e, p["w_out"]) + p["b_out"]
    B, N, P = logits.shape
    return logits.reshape(B, N * P), h_new


def reference_seq(obs_seq, nbr_seq, h0, p):
    def step(h, inp):
        obs, nbr = inp
        logits, h_new = reference_forward(obs, nbr, h, p)
        return h_new, logits
    h_final, logits_seq = jax.lax.scan(step, h0, (obs_seq, nbr_seq))
    return logits_seq, h_final


def init_params(key, d_obs, d_nbr, hidden, n_pow_opts):
    ks = jax.random.split(key, 12)
    s = 0.1
    return {
        "w_enc": s * jax.random.normal(ks[0], (d_obs, hidden), jnp.float32),
        "b_enc": s * jax.random.normal(ks[1], (1, hidden), jnp.float32),
        "w_ih":  s * jax.random.normal(ks[2], (3, hidden, hidden), jnp.float32),
        "b_ih":  s * jax.random.normal(ks[3], (3, 1, hidden), jnp.float32),
        "w_hh":  s * jax.random.normal(ks[4], (3, hidden, hidden), jnp.float32),
        "b_hh":  s * jax.random.normal(ks[5], (3, 1, hidden), jnp.float32),
        "w_nbr": s * jax.random.normal(ks[6], (d_nbr, hidden), jnp.float32),
        "b_nbr": s * jax.random.normal(ks[7], (1, hidden), jnp.float32),
        "w_agt": s * jax.random.normal(ks[8], (hidden, hidden), jnp.float32),
        "b_agt": s * jax.random.normal(ks[9], (1, hidden), jnp.float32),
        "w_out": s * jax.random.normal(ks[10], (hidden, n_pow_opts), jnp.float32),
        "b_out": s * jax.random.normal(ks[11], (1, n_pow_opts), jnp.float32),
    }


if __name__ == "__main__":
    T = 8            # timesteps folded into one kernel call
    B = 2            # batch (agents)
    D_OBS = 16       # agent (shared) observation feature dim
    N_NBR = 4        # number of neighbor nodes
    D_NBR = 16       # neighbor node feature dim
    HIDDEN = 32      # args.critic_hidden_size
    N_POW = 3        # args.n_pow_opts

    key = jax.random.PRNGKey(0)
    k_obs, k_nbr, k_par = jax.random.split(key, 3)

    obs_seq = jax.random.normal(k_obs, (T, B, D_OBS), jnp.float32)
    nbr_seq = jax.random.normal(k_nbr, (T, B, N_NBR, D_NBR), jnp.float32)
    h0 = jnp.zeros((B, HIDDEN), jnp.float32)   # init_hidden expanded to batch

    params = init_params(k_par, D_OBS, D_NBR, HIDDEN, N_POW)
    packed = pack_params(params)               # packed/padded once, reused

    # Sequence mode: recurrent loop runs inside the kernel (grid over T).
    logits_seq, h_T = adhoc_relational_q_seq(obs_seq, nbr_seq, h0, packed)
    jax.block_until_ready((logits_seq, h_T))

    ref_logits_seq, ref_h_T = reference_seq(obs_seq, nbr_seq, h0, params)
    assert logits_seq.shape == (T, B, N_NBR * N_POW) and h_T.shape == (B, HIDDEN)
    assert jnp.allclose(logits_seq, ref_logits_seq, atol=1e-4, rtol=1e-4)
    assert jnp.allclose(h_T, ref_h_T, atol=1e-4, rtol=1e-4)

    # Single-step mode (matches the original module forward signature).
    logits1, h1 = adhoc_relational_q(obs_seq[0], nbr_seq[0], h0, packed)
    jax.block_until_ready((logits1, h1))
    ref_logits1, ref_h1 = reference_forward(obs_seq[0], nbr_seq[0], h0, params)
    assert jnp.allclose(logits1, ref_logits1, atol=1e-4, rtol=1e-4)
    assert jnp.allclose(h1, ref_h1, atol=1e-4, rtol=1e-4)

    print("KERNEL_OK")
</pallas_src>

<mosaic_0001>
module attributes {stable_mosaic.version = 11 : i64} {
  func.func @adhoc_q_kernel(%arg0: i32, %arg1: memref<1x2x16xf32, #tpu.memory_space<vmem>>, %arg2: memref<1x8x16xf32, #tpu.memory_space<vmem>>, %arg3: memref<2x32xf32, #tpu.memory_space<vmem>>, %arg4: memref<16x32xf32, #tpu.memory_space<vmem>>, %arg5: memref<1x32xf32, #tpu.memory_space<vmem>>, %arg6: memref<64x128xf32, #tpu.memory_space<vmem>>, %arg7: memref<1x128xf32, #tpu.memory_space<vmem>>, %arg8: memref<16x32xf32, #tpu.memory_space<vmem>>, %arg9: memref<1x32xf32, #tpu.memory_space<vmem>>, %arg10: memref<32x32xf32, #tpu.memory_space<vmem>>, %arg11: memref<1x32xf32, #tpu.memory_space<vmem>>, %arg12: memref<32x128xf32, #tpu.memory_space<vmem>>, %arg13: memref<1x128xf32, #tpu.memory_space<vmem>>, %arg14: memref<1x8x128xf32, #tpu.memory_space<vmem>>, %arg15: memref<2x32xf32, #tpu.memory_space<vmem>>, %arg16: memref<2x64xf32, #tpu.memory_space<vmem>>, %arg17: memref<8x32xf32, #tpu.memory_space<vmem>>) attributes {dimension_semantics = [#tpu.dimension_semantics<arbitrary>], iteration_bounds = array<i64: 8>, scalar_prefetch = 0 : i64, scratch_operands = 2 : i64, tpu.core_type = #tpu.core_type<tc>, window_params = [{transform_indices = @transform_0, window_bounds = array<i64: 1, 2, 16>}, {transform_indices = @transform_1, window_bounds = array<i64: 1, 8, 16>}, {pipeline_mode = #tpu.pipeline_mode<synchronous>, transform_indices = @transform_2, window_bounds = array<i64: 2, 32>}, {pipeline_mode = #tpu.pipeline_mode<synchronous>, transform_indices = @transform_3, window_bounds = array<i64: 16, 32>}, {pipeline_mode = #tpu.pipeline_mode<synchronous>, transform_indices = @transform_4, window_bounds = array<i64: 1, 32>}, {pipeline_mode = #tpu.pipeline_mode<synchronous>, transform_indices = @transform_5, window_bounds = array<i64: 64, 128>}, {pipeline_mode = #tpu.pipeline_mode<synchronous>, transform_indices = @transform_6, window_bounds = array<i64: 1, 128>}, {pipeline_mode = #tpu.pipeline_mode<synchronous>, transform_indices = @transform_7, window_bounds = array<i64: 16, 32>}, {pipeline_mode = #tpu.pipeline_mode<synchronous>, transform_indices = @transform_8, window_bounds = array<i64: 1, 32>}, {pipeline_mode = #tpu.pipeline_mode<synchronous>, transform_indices = @transform_9, window_bounds = array<i64: 32, 32>}, {pipeline_mode = #tpu.pipeline_mode<synchronous>, transform_indices = @transform_10, window_bounds = array<i64: 1, 32>}, {pipeline_mode = #tpu.pipeline_mode<synchronous>, transform_indices = @transform_11, window_bounds = array<i64: 32, 128>}, {pipeline_mode = #tpu.pipeline_mode<synchronous>, transform_indices = @transform_12, window_bounds = array<i64: 1, 128>}, {transform_indices = @transform_13, window_bounds = array<i64: 1, 8, 128>}, {pipeline_mode = #tpu.pipeline_mode<synchronous>, transform_indices = @transform_14, window_bounds = array<i64: 2, 32>}]} {
    %c0_i32 = arith.constant 0 : i32
    %0 = arith.cmpi eq, %arg0, %c0_i32 : i32
    %1 = arith.extui %0 : i1 to i32
    %c0_i32_0 = arith.constant 0 : i32
    %2 = arith.cmpi ne, %1, %c0_i32_0 : i32
    scf.if %2 {
      %c0_52 = arith.constant 0 : index
      %c0_53 = arith.constant 0 : index
      %67 = vector.load %arg3[%c0_52, %c0_53] : memref<2x32xf32, #tpu.memory_space<vmem>>, vector<2x32xf32>
      %c0_54 = arith.constant 0 : index
      %c0_55 = arith.constant 0 : index
      %68 = vector.load %arg15[%c0_54, %c0_55] : memref<2x32xf32, #tpu.memory_space<vmem>>, vector<2x32xf32>
      tpu.vector_store %arg15[%c0_54, %c0_55], %67 {strides = array<i32>} : memref<2x32xf32, #tpu.memory_space<vmem>>, vector<2x32xf32>,
    } else {
    }
    %c0 = arith.constant 0 : index
    %c0_1 = arith.constant 0 : index
    %3 = vector.load %arg15[%c0, %c0_1] : memref<2x32xf32, #tpu.memory_space<vmem>>, vector<2x32xf32>
    %c0_2 = arith.constant 0 : index
    %c0_3 = arith.constant 0 : index
    %c0_4 = arith.constant 0 : index
    %4 = vector.load %arg1[%c0_2, %c0_3, %c0_4] : memref<1x2x16xf32, #tpu.memory_space<vmem>>, vector<1x2x16xf32>
    %5 = vector.shape_cast %4 : vector<1x2x16xf32> to vector<2x16xf32>
    %c0_5 = arith.constant 0 : index
    %c0_6 = arith.constant 0 : index
    %6 = vector.load %arg4[%c0_5, %c0_6] : memref<16x32xf32, #tpu.memory_space<vmem>>, vector<16x32xf32>
    %cst = arith.constant dense<0.000000e+00> : vector<2x32xf32>
    %7 = tpu.matmul %5, %6, %cst {dimension_numbers = #tpu.dot_dimension_numbers<[1], [0], [0], [1], [0, 0, 1, 1], [], []>} : vector<2x16xf32>, vector<16x32xf32>, vector<2x32xf32> -> vector<2x32xf32>
    %c0_7 = arith.constant 0 : index
    %c0_8 = arith.constant 0 : index
    %8 = vector.load %arg5[%c0_7, %c0_8] : memref<1x32xf32, #tpu.memory_space<vmem>>, vector<1x32xf32>
    %9 = vector.broadcast %8 : vector<1x32xf32> to vector<2x32xf32>
    %10 = arith.addf %7, %9 : vector<2x32xf32>
    %cst_9 = arith.constant 0.000000e+00 : f32
    %11 = vector.broadcast %cst_9 : f32 to vector<2x32xf32>
    %12 = arith.maximumf %10, %11 : vector<2x32xf32>
    %c0_10 = arith.constant 0 : index
    %c0_11 = arith.constant 0 : index
    %13 = vector.load %arg16[%c0_10, %c0_11] : memref<2x64xf32, #tpu.memory_space<vmem>>, vector<2x32xf32>
    tpu.vector_store %arg16[%c0_10, %c0_11], %12 {strides = array<i32>} : memref<2x64xf32, #tpu.memory_space<vmem>>, vector<2x32xf32>,
    %c0_12 = arith.constant 0 : index
    %c32 = arith.constant 32 : index
    %14 = vector.load %arg16[%c0_12, %c32] : memref<2x64xf32, #tpu.memory_space<vmem>>, vector<2x32xf32>
    tpu.vector_store %arg16[%c0_12, %c32], %3 {strides = array<i32>} : memref<2x64xf32, #tpu.memory_space<vmem>>, vector<2x32xf32>,
    %c0_13 = arith.constant 0 : index
    %c0_14 = arith.constant 0 : index
    %15 = vector.load %arg16[%c0_13, %c0_14] : memref<2x64xf32, #tpu.memory_space<vmem>>, vector<2x64xf32>
    %c0_15 = arith.constant 0 : index
    %c0_16 = arith.constant 0 : index
    %16 = vector.load %arg6[%c0_15, %c0_16] : memref<64x128xf32, #tpu.memory_space<vmem>>, vector<64x128xf32>
    %cst_17 = arith.constant dense<0.000000e+00> : vector<2x128xf32>
    %17 = tpu.matmul %15, %16, %cst_17 {dimension_numbers = #tpu.dot_dimension_numbers<[1], [0], [0], [1], [0, 0, 1, 1], [], []>} : vector<2x64xf32>, vector<64x128xf32>, vector<2x128xf32> -> vector<2x128xf32>
    %c0_18 = arith.constant 0 : index
    %c0_19 = arith.constant 0 : index
    %18 = vector.load %arg7[%c0_18, %c0_19] : memref<1x128xf32, #tpu.memory_space<vmem>>, vector<1x128xf32>
    %19 = vector.broadcast %18 : vector<1x128xf32> to vector<2x128xf32>
    %20 = arith.addf %17, %19 : vector<2x128xf32>
    %21 = vector.extract_strided_slice %20 {offsets = [0, 0], sizes = [2, 64], strides = [1, 1]} : vector<2x128xf32> to vector<2x64xf32>
    %22 = arith.negf %21 : vector<2x64xf32>
    %23 = math.exp %22 : vector<2x64xf32>
    %cst_20 = arith.constant 1.000000e+00 : f32
    %24 = vector.broadcast %cst_20 : f32 to vector<2x64xf32>
    %25 = arith.addf %24, %23 : vector<2x64xf32>
    %26 = arith.divf %24, %25 : vector<2x64xf32>
    %27 = vector.extract_strided_slice %26 {offsets = [0, 0], sizes = [2, 32], strides = [1, 1]} : vector<2x64xf32> to vector<2x32xf32>
    %28 = vector.extract_strided_slice %26 {offsets = [0, 32], sizes = [2, 32], strides = [1, 1]} : vector<2x64xf32> to vector<2x32xf32>
    %29 = vector.extract_strided_slice %20 {offsets = [0, 64], sizes = [2, 32], strides = [1, 1]} : vector<2x128xf32> to vector<2x32xf32>
    %30 = vector.extract_strided_slice %20 {offsets = [0, 96], sizes = [2, 32], strides = [1, 1]} : vector<2x128xf32> to vector<2x32xf32>
    %31 = arith.mulf %27, %30 : vector<2x32xf32>
    %32 = arith.addf %29, %31 : vector<2x32xf32>
    %33 = math.tanh %32 : vector<2x32xf32>
    %cst_21 = arith.constant 1.000000e+00 : f32
    %34 = vector.broadcast %cst_21 : f32 to vector<2x32xf32>
    %35 = arith.subf %34, %28 : vector<2x32xf32>
    %36 = arith.mulf %35, %33 : vector<2x32xf32>
    %37 = arith.mulf %28, %3 : vector<2x32xf32>
    %38 = arith.addf %36, %37 : vector<2x32xf32>
    %c0_22 = arith.constant 0 : index
    %c0_23 = arith.constant 0 : index
    %39 = vector.load %arg15[%c0_22, %c0_23] : memref<2x32xf32, #tpu.memory_space<vmem>>, vector<2x32xf32>
    tpu.vector_store %arg15[%c0_22, %c0_23], %38 {strides = array<i32>} : memref<2x32xf32, #tpu.memory_space<vmem>>, vector<2x32xf32>,
    %c0_24 = arith.constant 0 : index
    %c0_25 = arith.constant 0 : index
    %40 = vector.load %arg10[%c0_24, %c0_25] : memref<32x32xf32, #tpu.memory_space<vmem>>, vector<32x32xf32>
    %cst_26 = arith.constant dense<0.000000e+00> : vector<2x32xf32>
    %41 = tpu.matmul %38, %40, %cst_26 {dimension_numbers = #tpu.dot_dimension_numbers<[1], [0], [0], [1], [0, 0, 1, 1], [], []>} : vector<2x32xf32>, vector<32x32xf32>, vector<2x32xf32> -> vector<2x32xf32>
    %c0_27 = arith.constant 0 : index
    %c0_28 = arith.constant 0 : index
    %42 = vector.load %arg11[%c0_27, %c0_28] : memref<1x32xf32, #tpu.memory_space<vmem>>, vector<1x32xf32>
    %43 = vector.broadcast %42 : vector<1x32xf32> to vector<2x32xf32>
    %44 = arith.addf %41, %43 : vector<2x32xf32>
    %c0_29 = arith.constant 0 : index
    %c0_30 = arith.constant 0 : index
    %45 = vector.load %arg17[%c0_29, %c0_30] : memref<8x32xf32, #tpu.memory_space<vmem>>, vector<2x32xf32>
    tpu.vector_store %arg17[%c0_29, %c0_30], %44 {strides = array<i32>} : memref<8x32xf32, #tpu.memory_space<vmem>>, vector<2x32xf32>,
    %c2 = arith.constant 2 : index
    %c0_31 = arith.constant 0 : index
    %46 = vector.load %arg17[%c2, %c0_31] : memref<8x32xf32, #tpu.memory_space<vmem>>, vector<2x32xf32>
    tpu.vector_store %arg17[%c2, %c0_31], %44 {strides = array<i32>} : memref<8x32xf32, #tpu.memory_space<vmem>>, vector<2x32xf32>,
    %c4 = arith.constant 4 : index
    %c0_32 = arith.constant 0 : index
    %47 = vector.load %arg17[%c4, %c0_32] : memref<8x32xf32, #tpu.memory_space<vmem>>, vector<2x32xf32>
    tpu.vector_store %arg17[%c4, %c0_32], %44 {strides = array<i32>} : memref<8x32xf32, #tpu.memory_space<vmem>>, vector<2x32xf32>,
    %c6 = arith.constant 6 : index
    %c0_33 = arith.constant 0 : index
    %48 = vector.load %arg17[%c6, %c0_33] : memref<8x32xf32, #tpu.memory_space<vmem>>, vector<2x32xf32>
    tpu.vector_store %arg17[%c6, %c0_33], %44 {strides = array<i32>} : memref<8x32xf32, #tpu.memory_space<vmem>>, vector<2x32xf32>,
    %c0_34 = arith.constant 0 : index
    %c0_35 = arith.constant 0 : index
    %c0_36 = arith.constant 0 : index
    %49 = vector.load %arg2[%c0_34, %c0_35, %c0_36] : memref<1x8x16xf32, #tpu.memory_space<vmem>>, vector<1x8x16xf32>
    %50 = vector.shape_cast %49 : vector<1x8x16xf32> to vector<8x16xf32>
    %c0_37 = arith.constant 0 : index
    %c0_38 = arith.constant 0 : index
    %51 = vector.load %arg8[%c0_37, %c0_38] : memref<16x32xf32, #tpu.memory_space<vmem>>, vector<16x32xf32>
    %cst_39 = arith.constant dense<0.000000e+00> : vector<8x32xf32>
    %52 = tpu.matmul %50, %51, %cst_39 {dimension_numbers = #tpu.dot_dimension_numbers<[1], [0], [0], [1], [0, 0, 1, 1], [], []>} : vector<8x16xf32>, vector<16x32xf32>, vector<8x32xf32> -> vector<8x32xf32>
    %c0_40 = arith.constant 0 : index
    %c0_41 = arith.constant 0 : index
    %53 = vector.load %arg9[%c0_40, %c0_41] : memref<1x32xf32, #tpu.memory_space<vmem>>, vector<1x32xf32>
    %54 = vector.broadcast %53 : vector<1x32xf32> to vector<8x32xf32>
    %55 = arith.addf %52, %54 : vector<8x32xf32>
    %c0_42 = arith.constant 0 : index
    %c0_43 = arith.constant 0 : index
    %56 = vector.load %arg17[%c0_42, %c0_43] : memref<8x32xf32, #tpu.memory_space<vmem>>, vector<8x32xf32>
    %57 = arith.addf %55, %56 : vector<8x32xf32>
    %58 = math.tanh %57 : vector<8x32xf32>
    %c0_44 = arith.constant 0 : index
    %c0_45 = arith.constant 0 : index
    %59 = vector.load %arg12[%c0_44, %c0_45] : memref<32x128xf32, #tpu.memory_space<vmem>>, vector<32x128xf32>
    %cst_46 = arith.constant dense<0.000000e+00> : vector<8x128xf32>
    %60 = tpu.matmul %58, %59, %cst_46 {dimension_numbers = #tpu.dot_dimension_numbers<[1], [0], [0], [1], [0, 0, 1, 1], [], []>} : vector<8x32xf32>, vector<32x128xf32>, vector<8x128xf32> -> vector<8x128xf32>
    %c0_47 = arith.constant 0 : index
    %c0_48 = arith.constant 0 : index
    %61 = vector.load %arg13[%c0_47, %c0_48] : memref<1x128xf32, #tpu.memory_space<vmem>>, vector<1x128xf32>
    %62 = vector.broadcast %61 : vector<1x128xf32> to vector<8x128xf32>
    %63 = arith.addf %60, %62 : vector<8x128xf32>
    %c0_49 = arith.constant 0 : index
    %c0_50 = arith.constant 0 : index
    %c0_51 = arith.constant 0 : index
    %64 = vector.load %arg14[%c0_49, %c0_50, %c0_51] : memref<1x8x128xf32, #tpu.memory_space<vmem>>, vector<1x8x128xf32>
    %65 = vector.shape_cast %64 : vector<1x8x128xf32> to vector<8x128xf32>
    %66 = vector.shape_cast %63 : vector<8x128xf32> to vector<1x8x128xf32>
    tpu.vector_store %arg14[%c0_49, %c0_50, %c0_51], %66 {strides = array<i32>} : memref<1x8x128xf32, #tpu.memory_space<vmem>>, vector<1x8x128xf32>,
    return
  }
  func.func @transform_0(%arg0: i32) -> (i32, i32, i32) {
    %c0_i32 = arith.constant 0 : i32
    %c0_i32_0 = arith.constant 0 : i32
    %c0_i32_1 = arith.constant 0 : i32
    return %arg0, %c0_i32, %c0_i32_0 : i32, i32, i32
  }
  func.func @transform_1(%arg0: i32) -> (i32, i32, i32) {
    %c0_i32 = arith.constant 0 : i32
    %c0_i32_0 = arith.constant 0 : i32
    %c0_i32_1 = arith.constant 0 : i32
    return %arg0, %c0_i32, %c0_i32_0 : i32, i32, i32
  }
  func.func @transform_2(%arg0: i32) -> (i32, i32) {
    %c0_i32 = arith.constant 0 : i32
    %c0_i32_0 = arith.constant 0 : i32
    %c0_i32_1 = arith.constant 0 : i32
    return %c0_i32, %c0_i32_0 : i32, i32
  }
  func.func @transform_3(%arg0: i32) -> (i32, i32) {
    %c0_i32 = arith.constant 0 : i32
    %c0_i32_0 = arith.constant 0 : i32
    %c0_i32_1 = arith.constant 0 : i32
    return %c0_i32, %c0_i32_0 : i32, i32
  }
  func.func @transform_4(%arg0: i32) -> (i32, i32) {
    %c0_i32 = arith.constant 0 : i32
    %c0_i32_0 = arith.constant 0 : i32
    %c0_i32_1 = arith.constant 0 : i32
    return %c0_i32, %c0_i32_0 : i32, i32
  }
  func.func @transform_5(%arg0: i32) -> (i32, i32) {
    %c0_i32 = arith.constant 0 : i32
    %c0_i32_0 = arith.constant 0 : i32
    %c0_i32_1 = arith.constant 0 : i32
    return %c0_i32, %c0_i32_0 : i32, i32
  }
  func.func @transform_6(%arg0: i32) -> (i32, i32) {
    %c0_i32 = arith.constant 0 : i32
    %c0_i32_0 = arith.constant 0 : i32
    %c0_i32_1 = arith.constant 0 : i32
    return %c0_i32, %c0_i32_0 : i32, i32
  }
  func.func @transform_7(%arg0: i32) -> (i32, i32) {
    %c0_i32 = arith.constant 0 : i32
    %c0_i32_0 = arith.constant 0 : i32
    %c0_i32_1 = arith.constant 0 : i32
    return %c0_i32, %c0_i32_0 : i32, i32
  }
  func.func @transform_8(%arg0: i32) -> (i32, i32) {
    %c0_i32 = arith.constant 0 : i32
    %c0_i32_0 = arith.constant 0 : i32
    %c0_i32_1 = arith.constant 0 : i32
    return %c0_i32, %c0_i32_0 : i32, i32
  }
  func.func @transform_9(%arg0: i32) -> (i32, i32) {
    %c0_i32 = arith.constant 0 : i32
    %c0_i32_0 = arith.constant 0 : i32
    %c0_i32_1 = arith.constant 0 : i32
    return %c0_i32, %c0_i32_0 : i32, i32
  }
  func.func @transform_10(%arg0: i32) -> (i32, i32) {
    %c0_i32 = arith.constant 0 : i32
    %c0_i32_0 = arith.constant 0 : i32
    %c0_i32_1 = arith.constant 0 : i32
    return %c0_i32, %c0_i32_0 : i32, i32
  }
  func.func @transform_11(%arg0: i32) -> (i32, i32) {
    %c0_i32 = arith.constant 0 : i32
    %c0_i32_0 = arith.constant 0 : i32
    %c0_i32_1 = arith.constant 0 : i32
    return %c0_i32, %c0_i32_0 : i32, i32
  }
  func.func @transform_12(%arg0: i32) -> (i32, i32) {
    %c0_i32 = arith.constant 0 : i32
    %c0_i32_0 = arith.constant 0 : i32
    %c0_i32_1 = arith.constant 0 : i32
    return %c0_i32, %c0_i32_0 : i32, i32
  }
  func.func @transform_13(%arg0: i32) -> (i32, i32, i32) {
    %c0_i32 = arith.constant 0 : i32
    %c0_i32_0 = arith.constant 0 : i32
    %c0_i32_1 = arith.constant 0 : i32
    return %arg0, %c0_i32, %c0_i32_0 : i32, i32, i32
  }
  func.func @transform_14(%arg0: i32) -> (i32, i32) {
    %c0_i32 = arith.constant 0 : i32
    %c0_i32_0 = arith.constant 0 : i32
    %c0_i32_1 = arith.constant 0 : i32
    return %c0_i32, %c0_i32_0 : i32, i32
  }
}

</mosaic_0001>

<llo_original>
// kernel: tpu_custom_call.1
$region0: #{tpu_custom_call.1}
  #allocation0 [shape = 'u32[]', space=smem, size = 0x4, offset = 0x4, fixed_abs, tag = 'smem constant byte address 0x4 - core index']
  #allocation1 [shape = 'u32[144,128]{1,0:T(1,128)}', space=vmem, size = 0x12000, scoped, tag = 'internal scratch']
  #allocation2 [shape = 'f32[2,64]{1,0:T(2,128)}', space=vmem, size = 0x400, scoped, tag = 'scratch operand']
  #allocation3 [shape = 'f32[8,32]{1,0:T(8,128)}', space=vmem, size = 0x1000, scoped, tag = 'scratch operand']
  %s0 = inlined_call_operand.hbm [shape: f32[8,2,16], index: 0, kind: input, shape index: {}]
  %s1 = inlined_call_operand.hbm [shape: f32[8,8,16], index: 1, kind: input, shape index: {}]
  %s2 = inlined_call_operand.vmem [shape: f32[2,32], index: 2, kind: input, shape index: {}]
  %s3 = inlined_call_operand.hbm [shape: f32[16,32], index: 3, kind: input, shape index: {}]
  %s4 = inlined_call_operand.hbm [shape: f32[1,32], index: 4, kind: input, shape index: {}]
  %s5 = inlined_call_operand.hbm [shape: f32[64,128], index: 5, kind: input, shape index: {}]
  %s6 = inlined_call_operand.hbm [shape: f32[1,128], index: 6, kind: input, shape index: {}]
  %s7 = inlined_call_operand.hbm [shape: f32[16,32], index: 7, kind: input, shape index: {}]
  %s8 = inlined_call_operand.hbm [shape: f32[1,32], index: 8, kind: input, shape index: {}]
  %s9 = inlined_call_operand.vmem [shape: f32[32,32], index: 9, kind: input, shape index: {}]
  %s10 = inlined_call_operand.vmem [shape: f32[1,32], index: 10, kind: input, shape index: {}]
  %s11 = inlined_call_operand.hbm [shape: f32[32,128], index: 11, kind: input, shape index: {}]
  %s12 = inlined_call_operand.vmem [shape: f32[1,128], index: 12, kind: input, shape index: {}]
  %s13 = inlined_call_operand.hbm [shape: f32[8,8,128], index: 13, kind: output, shape index: {0}]
  %s14 = inlined_call_operand.hbm [shape: f32[2,32], index: 14, kind: output, shape index: {1}]
  %15 = xla_tuple %s13, %s14
  %s16 = sld [smem:[#allocation0]]
  $region133: #{tpu_custom_call.1} parent=0
    _
  %s18 = ssub.s32 1, %s16
  %s19 = scalar_select 0, %s18, %s16
  $region1: #{tpu_custom_call.1} parent=0
    #allocation4 [shape = 'u8[2048]{0}', space=vmem, size = 0x800, scoped, tag = 'input window, operand 0']
    #allocation5 [shape = 's32[2]{0}', space=sflag, size = 0x8, scoped, tag = 'scoped memory for tpu_custom_call.1']
    #allocation6 [shape = 's32[2]{0}', space=sflag, size = 0x8, scoped, tag = 'scoped memory for tpu_custom_call.1']
    #allocation7 [shape = 'u8[8192]{0}', space=vmem, size = 0x2000, scoped, tag = 'input window, operand 1']
    #allocation8 [shape = 's32[2]{0}', space=sflag, size = 0x8, scoped, tag = 'scoped memory for tpu_custom_call.1']
    #allocation9 [shape = 'u8[8192]{0}', space=vmem, size = 0x2000, scoped, tag = 'input window, operand 3, single buffered']
    #allocation10 [shape = 'u8[512]{0}', space=vmem, size = 0x400, scoped, tag = 'input window, operand 4, single buffered']
    #allocation11 [shape = 's32[1]{0}', space=sflag, size = 0x4, scoped, tag = 'scoped memory for tpu_custom_call.1']
    #allocation12 [shape = 'u8[32768]{0}', space=vmem, size = 0x8000, scoped, tag = 'input window, operand 5, single buffered']
    #allocation13 [shape = 'u8[512]{0}', space=vmem, size = 0x400, scoped, tag = 'input window, operand 6, single buffered']
    #allocation14 [shape = 's32[1]{0}', space=sflag, size = 0x4, scoped, tag = 'scoped memory for tpu_custom_call.1']
    #allocation15 [shape = 'u8[8192]{0}', space=vmem, size = 0x2000, scoped, tag = 'input window, operand 7, single buffered']
    #allocation16 [shape = 'u8[512]{0}', space=vmem, size = 0x400, scoped, tag = 'input window, operand 8, single buffered']
    #allocation17 [shape = 's32[1]{0}', space=sflag, size = 0x4, scoped, tag = 'scoped memory for tpu_custom_call.1']
    #allocation18 [shape = 'u8[16384]{0}', space=vmem, size = 0x4000, scoped, tag = 'input window, operand 11, single buffered']
    #allocation19 [shape = 'u8[8192]{0}', space=vmem, size = 0x2000, scoped, tag = 'output window, operand 0']
    #allocation20 [shape = 'u8[1024]{0}', space=vmem, size = 0x400, scoped, tag = 'output window, operand 1, single buffered']
    #allocation21 [shape = 's32[1]{0}', space=sflag, size = 0x4, scoped, tag = 'scoped memory for tpu_custom_call.1']
    %20 = vsyncpa [#allocation5], 0
    %s21 = scalar_lea.sflag [#allocation5], 1
    %22 = vsyncpa %s21, 0
    %23 = vsyncpa [#allocation8], 0
    %s24 = scalar_lea.sflag [#allocation8], 1
    %25 = vsyncpa %s24, 0
    %26 = vsyncpa [#allocation11], 0
    %27 = vsyncpa [#allocation14], 0
    %28 = vsyncpa [#allocation17], 0
    %29 = vsyncpa [#allocation6], 0
    %s30 = scalar_lea.sflag [#allocation6], 1
    %31 = vsyncpa %s30, 0
    %32 = vsyncpa [#allocation21], 0
    loop: start=0, step=1, limit=10
    $region2: #{tpu_custom_call.1} parent=1 // loop_pre_header
      _
    $region3: #{tpu_custom_call.1} parent=1 // loop_header
      %s34 = sphi 0, %s38
      %p35 = scmp.ge.s32.totalorder %s34, 10
      %s44 = sphi 0, %s46
      %s47 = sphi 0, %s44
      %s48 = sphi 0, %s47
      %s64 = sphi 0, %s48
      %s70 = sphi 0, %s72
      %s73 = sphi 0, %s70
      %s74 = sphi 0, %s73
      %s90 = sphi 0, %s74
      %s94 = sphi 0, %s94
      %s96 = sphi 0, %s94
      %s97 = sphi 0, %s96
      %s111 = sphi 0, %s97
      %s115 = sphi 0, %s115
      %s117 = sphi 0, %s115
      %s118 = sphi 0, %s117
      %s132 = sphi 0, %s118
      %s136 = sphi 0, %s136
      %s138 = sphi 0, %s136
      %s139 = sphi 0, %s138
      %s153 = sphi 0, %s139
      %s157 = sphi 0, %s157
      %s159 = sphi 0, %s157
      %s160 = sphi 0, %s159
      %s174 = sphi 0, %s160
      %s178 = sphi 0, %s178
      %s180 = sphi 0, %s178
      %s181 = sphi 0, %s180
      %s195 = sphi 0, %s181
      %s199 = sphi 0, %s199
      %s201 = sphi 0, %s199
      %s202 = sphi 0, %s201
      %s216 = sphi 0, %s202
      %s220 = sphi 0, %s220
      %s222 = sphi 0, %s220
      %s223 = sphi 0, %s222
      %s237 = sphi 0, %s223
      %s241 = sphi 0, %s241
      %s243 = sphi 0, %s241
      %s244 = sphi 0, %s243
      %s258 = sphi 0, %s244
      %s262 = sphi 0, %s262
      %s264 = sphi 0, %s262
      %s265 = sphi 0, %s264
      %s279 = sphi 0, %s265
      %s283 = sphi 0, %s283
      %s285 = sphi 0, %s283
      %s286 = sphi 0, %s285
      %s300 = sphi 0, %s286
      %s304 = sphi 0, %s304
      %s306 = sphi 0, %s304
      %s307 = sphi 0, %s306
      %s321 = sphi 0, %s307
      %s327 = sphi 0, %s329
      %s330 = sphi 0, %s327
      %s331 = sphi 0, %s330
      %s347 = sphi 0, %s331
      %s351 = sphi 0, %s351
      %s353 = sphi 0, %s351
      %s354 = sphi 0, %s353
      %s368 = sphi 0, %s354
    $region4: #{tpu_custom_call.1} parent=1 // loop_header_branch
      %37 = sbr.rel (%p35) target = $region8
    $region5: #{tpu_custom_call.1} parent=1 // loop_body
      %s39 = ssub.s32 %s34, 1
      %s40 = ssub.s32 %s34, 2
      %s41 = sadd.s32 %s34, 1
      %s42 = ssub.s32 %s34, %s41
      %p43 = scmp.eq.s32.totalorder %s42, 0
      %s45 = sadd.s32 %s44, 1
      %s46 = scalar_select %p43, %s44, %s45
      %p49 = pneg %p43
      %p50 = scmp.eq.s32.totalorder %s34, 7
      %p51 = por %p49, %p50
      %p52 = scmp.ne.s32.totalorder %s44, %s47
      %p53 = scmp.eq.s32.totalorder %s34, 0
      %p54 = por %p52, %p53
      %p55 = scmp.ne.s32.totalorder %s44, %s47
      %p56 = scmp.eq.s32.totalorder %s39, 7
      %p57 = por %p55, %p56
      %p58 = scmp.ne.s32.totalorder %s47, %s48
      %p59 = scmp.eq.s32.totalorder %s39, 0
      %p60 = por %p58, %p59
      %p61 = scmp.ne.s32.totalorder %s47, %s48
      %p62 = scmp.eq.s32.totalorder %s40, 7
      %p63 = por %p61, %p62
      %p65 = scmp.ne.s32.totalorder %s48, %s64
      %p66 = scmp.eq.s32.totalorder %s40, 0
      %p67 = por %p65, %p66
      %s68 = ssub.s32 %s34, %s41
      %p69 = scmp.eq.s32.totalorder %s68, 0
      %s71 = sadd.s32 %s70, 1
      %s72 = scalar_select %p69, %s70, %s71
      %p75 = pneg %p69
      %p76 = scmp.eq.s32.totalorder %s34, 7
      %p77 = por %p75, %p76
      %p78 = scmp.ne.s32.totalorder %s70, %s73
      %p79 = scmp.eq.s32.totalorder %s34, 0
      %p80 = por %p78, %p79
      %p81 = scmp.ne.s32.totalorder %s70, %s73
      %p82 = scmp.eq.s32.totalorder %s39, 7
      %p83 = por %p81, %p82
      %p84 = scmp.ne.s32.totalorder %s73, %s74
      %p85 = scmp.eq.s32.totalorder %s39, 0
      %p86 = por %p84, %p85
      %p87 = scmp.ne.s32.totalorder %s73, %s74
      %p88 = scmp.eq.s32.totalorder %s40, 7
      %p89 = por %p87, %p88
      %p91 = scmp.ne.s32.totalorder %s74, %s90
      %p92 = scmp.eq.s32.totalorder %s40, 0
      %p93 = por %p91, %p92
      %s95 = sadd.s32 %s94, 1
      %p98 = scmp.eq.s32.totalorder %s34, 7
      %p99 = scmp.ne.s32.totalorder %s94, %s96
      %p100 = scmp.eq.s32.totalorder %s34, 0
      %p101 = por %p99, %p100
      %p102 = scmp.ne.s32.totalorder %s94, %s96
      %p103 = scmp.eq.s32.totalorder %s39, 7
      %p104 = por %p102, %p103
      %p105 = scmp.ne.s32.totalorder %s96, %s97
      %p106 = scmp.eq.s32.totalorder %s39, 0
      %p107 = por %p105, %p106
      %p108 = scmp.ne.s32.totalorder %s96, %s97
      %p109 = scmp.eq.s32.totalorder %s40, 7
      %p110 = por %p108, %p109
      %p112 = scmp.ne.s32.totalorder %s97, %s111
      %p113 = scmp.eq.s32.totalorder %s40, 0
      %p114 = por %p112, %p113
      %s116 = sadd.s32 %s115, 1
      %p119 = scmp.eq.s32.totalorder %s34, 7
      %p120 = scmp.ne.s32.totalorder %s115, %s117
      %p121 = scmp.eq.s32.totalorder %s34, 0
      %p122 = por %p120, %p121
      %p123 = scmp.ne.s32.totalorder %s115, %s117
      %p124 = scmp.eq.s32.totalorder %s39, 7
      %p125 = por %p123, %p124
      %p126 = scmp.ne.s32.totalorder %s117, %s118
      %p127 = scmp.eq.s32.totalorder %s39, 0
      %p128 = por %p126, %p127
      %p129 = scmp.ne.s32.totalorder %s117, %s118
      %p130 = scmp.eq.s32.totalorder %s40, 7
      %p131 = por %p129, %p130
      %p133 = scmp.ne.s32.totalorder %s118, %s132
      %p134 = scmp.eq.s32.totalorder %s40, 0
      %p135 = por %p133, %p134
      %s137 = sadd.s32 %s136, 1
      %p140 = scmp.eq.s32.totalorder %s34, 7
      %p141 = scmp.ne.s32.totalorder %s136, %s138
      %p142 = scmp.eq.s32.totalorder %s34, 0
      %p143 = por %p141, %p142
      %p144 = scmp.ne.s32.totalorder %s136, %s138
      %p145 = scmp.eq.s32.totalorder %s39, 7
      %p146 = por %p144, %p145
      %p147 = scmp.ne.s32.totalorder %s138, %s139
      %p148 = scmp.eq.s32.totalorder %s39, 0
      %p149 = por %p147, %p148
      %p150 = scmp.ne.s32.totalorder %s138, %s139
      %p151 = scmp.eq.s32.totalorder %s40, 7
      %p152 = por %p150, %p151
      %p154 = scmp.ne.s32.totalorder %s139, %s153
      %p155 = scmp.eq.s32.totalorder %s40, 0
      %p156 = por %p154, %p155
      %s158 = sadd.s32 %s157, 1
      %p161 = scmp.eq.s32.totalorder %s34, 7
      %p162 = scmp.ne.s32.totalorder %s157, %s159
      %p163 = scmp.eq.s32.totalorder %s34, 0
      %p164 = por %p162, %p163
      %p165 = scmp.ne.s32.totalorder %s157, %s159
      %p166 = scmp.eq.s32.totalorder %s39, 7
      %p167 = por %p165, %p166
      %p168 = scmp.ne.s32.totalorder %s159, %s160
      %p169 = scmp.eq.s32.totalorder %s39, 0
      %p170 = por %p168, %p169
      %p171 = scmp.ne.s32.totalorder %s159, %s160
      %p172 = scmp.eq.s32.totalorder %s40, 7
      %p173 = por %p171, %p172
      %p175 = scmp.ne.s32.totalorder %s160, %s174
      %p176 = scmp.eq.s32.totalorder %s40, 0
      %p177 = por %p175, %p176
      %s179 = sadd.s32 %s178, 1
      %p182 = scmp.eq.s32.totalorder %s34, 7
      %p183 = scmp.ne.s32.totalorder %s178, %s180
      %p184 = scmp.eq.s32.totalorder %s34, 0
      %p185 = por %p183, %p184
      %p186 = scmp.ne.s32.totalorder %s178, %s180
      %p187 = scmp.eq.s32.totalorder %s39, 7
      %p188 = por %p186, %p187
      %p189 = scmp.ne.s32.totalorder %s180, %s181
      %p190 = scmp.eq.s32.totalorder %s39, 0
      %p191 = por %p189, %p190
      %p192 = scmp.ne.s32.totalorder %s180, %s181
      %p193 = scmp.eq.s32.totalorder %s40, 7
      %p194 = por %p192, %p193
      %p196 = scmp.ne.s32.totalorder %s181, %s195
      %p197 = scmp.eq.s32.totalorder %s40, 0
      %p198 = por %p196, %p197
      %s200 = sadd.s32 %s199, 1
      %p203 = scmp.eq.s32.totalorder %s34, 7
      %p204 = scmp.ne.s32.totalorder %s199, %s201
      %p205 = scmp.eq.s32.totalorder %s34, 0
      %p206 = por %p204, %p205
      %p207 = scmp.ne.s32.totalorder %s199, %s201
      %p208 = scmp.eq.s32.totalorder %s39, 7
      %p209 = por %p207, %p208
      %p210 = scmp.ne.s32.totalorder %s201, %s202
      %p211 = scmp.eq.s32.totalorder %s39, 0
      %p212 = por %p210, %p211
      %p213 = scmp.ne.s32.totalorder %s201, %s202
      %p214 = scmp.eq.s32.totalorder %s40, 7
      %p215 = por %p213, %p214
      %p217 = scmp.ne.s32.totalorder %s202, %s216
      %p218 = scmp.eq.s32.totalorder %s40, 0
      %p219 = por %p217, %p218
      %s221 = sadd.s32 %s220, 1
      %p224 = scmp.eq.s32.totalorder %s34, 7
      %p225 = scmp.ne.s32.totalorder %s220, %s222
      %p226 = scmp.eq.s32.totalorder %s34, 0
      %p227 = por %p225, %p226
      %p228 = scmp.ne.s32.totalorder %s220, %s222
      %p229 = scmp.eq.s32.totalorder %s39, 7
      %p230 = por %p228, %p229
      %p231 = scmp.ne.s32.totalorder %s222, %s223
      %p232 = scmp.eq.s32.totalorder %s39, 0
      %p233 = por %p231, %p232
      %p234 = scmp.ne.s32.totalorder %s222, %s223
      %p235 = scmp.eq.s32.totalorder %s40, 7
      %p236 = por %p234, %p235
      %p238 = scmp.ne.s32.totalorder %s223, %s237
      %p239 = scmp.eq.s32.totalorder %s40, 0
      %p240 = por %p238, %p239
      %s242 = sadd.s32 %s241, 1
      %p245 = scmp.eq.s32.totalorder %s34, 7
      %p246 = scmp.ne.s32.totalorder %s241, %s243
      %p247 = scmp.eq.s32.totalorder %s34, 0
      %p248 = por %p246, %p247
      %p249 = scmp.ne.s32.totalorder %s241, %s243
      %p250 = scmp.eq.s32.totalorder %s39, 7
      %p251 = por %p249, %p250
      %p252 = scmp.ne.s32.totalorder %s243, %s244
      %p253 = scmp.eq.s32.totalorder %s39, 0
      %p254 = por %p252, %p253
      %p255 = scmp.ne.s32.totalorder %s243, %s244
      %p256 = scmp.eq.s32.totalorder %s40, 7
      %p257 = por %p255, %p256
      %p259 = scmp.ne.s32.totalorder %s244, %s258
      %p260 = scmp.eq.s32.totalorder %s40, 0
      %p261 = por %p259, %p260
      %s263 = sadd.s32 %s262, 1
      %p266 = scmp.eq.s32.totalorder %s34, 7
      %p267 = scmp.ne.s32.totalorder %s262, %s264
      %p268 = scmp.eq.s32.totalorder %s34, 0
      %p269 = por %p267, %p268
      %p270 = scmp.ne.s32.totalorder %s262, %s264
      %p271 = scmp.eq.s32.totalorder %s39, 7
      %p272 = por %p270, %p271
      %p273 = scmp.ne.s32.totalorder %s264, %s265
      %p274 = scmp.eq.s32.totalorder %s39, 0
      %p275 = por %p273, %p274
      %p276 = scmp.ne.s32.totalorder %s264, %s265
      %p277 = scmp.eq.s32.totalorder %s40, 7
      %p278 = por %p276, %p277
      %p280 = scmp.ne.s32.totalorder %s265, %s279
      %p281 = scmp.eq.s32.totalorder %s40, 0
      %p282 = por %p280, %p281
      %s284 = sadd.s32 %s283, 1
      %p287 = scmp.eq.s32.totalorder %s34, 7
      %p288 = scmp.ne.s32.totalorder %s283, %s285
      %p289 = scmp.eq.s32.totalorder %s34, 0
      %p290 = por %p288, %p289
      %p291 = scmp.ne.s32.totalorder %s283, %s285
      %p292 = scmp.eq.s32.totalorder %s39, 7
      %p293 = por %p291, %p292
      %p294 = scmp.ne.s32.totalorder %s285, %s286
      %p295 = scmp.eq.s32.totalorder %s39, 0
      %p296 = por %p294, %p295
      %p297 = scmp.ne.s32.totalorder %s285, %s286
      %p298 = scmp.eq.s32.totalorder %s40, 7
      %p299 = por %p297, %p298
      %p301 = scmp.ne.s32.totalorder %s286, %s300
      %p302 = scmp.eq.s32.totalorder %s40, 0
      %p303 = por %p301, %p302
      %s305 = sadd.s32 %s304, 1
      %p308 = scmp.eq.s32.totalorder %s34, 7
      %p309 = scmp.ne.s32.totalorder %s304, %s306
      %p310 = scmp.eq.s32.totalorder %s34, 0
      %p311 = por %p309, %p310
      %p312 = scmp.ne.s32.totalorder %s304, %s306
      %p313 = scmp.eq.s32.totalorder %s39, 7
      %p314 = por %p312, %p313
      %p315 = scmp.ne.s32.totalorder %s306, %s307
      %p316 = scmp.eq.s32.totalorder %s39, 0
      %p317 = por %p315, %p316
      %p318 = scmp.ne.s32.totalorder %s306, %s307
      %p319 = scmp.eq.s32.totalorder %s40, 7
      %p320 = por %p318, %p319
      %p322 = scmp.ne.s32.totalorder %s307, %s321
      %p323 = scmp.eq.s32.totalorder %s40, 0
      %p324 = por %p322, %p323
      %s325 = ssub.s32 %s34, %s41
      %p326 = scmp.eq.s32.totalorder %s325, 0
      %s328 = sadd.s32 %s327, 1
      %s329 = scalar_select %p326, %s327, %s328
      %p332 = pneg %p326
      %p333 = scmp.eq.s32.totalorder %s34, 7
      %p334 = por %p332, %p333
      %p335 = scmp.ne.s32.totalorder %s327, %s330
      %p336 = scmp.eq.s32.totalorder %s34, 0
      %p337 = por %p335, %p336
      %p338 = scmp.ne.s32.totalorder %s327, %s330
      %p339 = scmp.eq.s32.totalorder %s39, 7
      %p340 = por %p338, %p339
      %p341 = scmp.ne.s32.totalorder %s330, %s331
      %p342 = scmp.eq.s32.totalorder %s39, 0
      %p343 = por %p341, %p342
      %p344 = scmp.ne.s32.totalorder %s330, %s331
      %p345 = scmp.eq.s32.totalorder %s40, 7
      %p346 = por %p344, %p345
      %p348 = scmp.ne.s32.totalorder %s331, %s347
      %p349 = scmp.eq.s32.totalorder %s40, 0
      %p350 = por %p348, %p349
      %s352 = sadd.s32 %s351, 1
      %p355 = scmp.eq.s32.totalorder %s34, 7
      %p356 = scmp.ne.s32.totalorder %s351, %s353
      %p357 = scmp.eq.s32.totalorder %s34, 0
      %p358 = por %p356, %p357
      %p359 = scmp.ne.s32.totalorder %s351, %s353
      %p360 = scmp.eq.s32.totalorder %s39, 7
      %p361 = por %p359, %p360
      %p362 = scmp.ne.s32.totalorder %s353, %s354
      %p363 = scmp.eq.s32.totalorder %s39, 0
      %p364 = por %p362, %p363
      %p365 = scmp.ne.s32.totalorder %s353, %s354
      %p366 = scmp.eq.s32.totalorder %s40, 7
      %p367 = por %p365, %p366
      %p369 = scmp.ne.s32.totalorder %s354, %s368
      %p370 = scmp.eq.s32.totalorder %s40, 0
      %p371 = por %p369, %p370
      %p372 = scmp.le.s32.totalorder 1, %s34
      %p373 = scmp.lt.s32.totalorder %s34, 9
      %p374 = pnand %p372, %p373
      %p375 = pneg %p374
      // Predicated region
      $region9: #{tpu_custom_call.1} parent=5 // pred_check
        _
      $region10: #{tpu_custom_call.1} parent=5 // pred_check_branch
        %377 = sbr.rel (%p374) target = $region12
      $region11: #{tpu_custom_call.1} parent=5 // pred_region
        %s378 = ssub.s32 %s34, 1
        // Predicated region
        $region13: #{tpu_custom_call.1} parent=11 // pred_check
          %p379 = pneg %p107
        $region14: #{tpu_custom_call.1} parent=11 // pred_check_branch
          %381 = sbr.rel (%p379) target = $region16
        $region15: #{tpu_custom_call.1} parent=11 // pred_region
          _
        $region16: #{tpu_custom_call.1} parent=11 // pred_fallthru
          _
        // Predicated region
        $region17: #{tpu_custom_call.1} parent=11 // pred_check
          %p382 = pneg %p128
        $region18: #{tpu_custom_call.1} parent=11 // pred_check_branch
          %384 = sbr.rel (%p382) target = $region20
        $region19: #{tpu_custom_call.1} parent=11 // pred_region
          %s386 = ssub.s32 256, 256
          %387 = vsyncadd [#allocation8], %s386
          %s388 = sshll.u32 [#allocation9], 4
          %s389 = int_to_ptr.vmem [resolvable:$true] %s388
          %394 = dma.hbm_to_vmem [thread:$0]  %s3, 256, %s389, [#allocation8], 128, 128, 8
        $region20: #{tpu_custom_call.1} parent=11 // pred_fallthru
          _
        // Predicated region
        $region21: #{tpu_custom_call.1} parent=11 // pred_check
          %p395 = pneg %p149
        $region22: #{tpu_custom_call.1} parent=11 // pred_check_branch
          %397 = sbr.rel (%p395) target = $region24
        $region23: #{tpu_custom_call.1} parent=11 // pred_region
          %s399 = ssub.s32 16, 16
          %400 = vsyncadd [#allocation11], %s399
          %s402 = sshll.u32 [#allocation10], 4
          %s403 = int_to_ptr.vmem [resolvable:$true] %s402
          %405 = dma.hbm_to_vmem [thread:$0]  %s4, 16, %s403, [#allocation11]
        $region24: #{tpu_custom_call.1} parent=11 // pred_fallthru
          _
        // Predicated region
        $region25: #{tpu_custom_call.1} parent=11 // pred_check
          %p406 = pneg %p170
        $region26: #{tpu_custom_call.1} parent=11 // pred_check_branch
          %408 = sbr.rel (%p406) target = $region28
        $region27: #{tpu_custom_call.1} parent=11 // pred_region
          %s410 = ssub.s32 1024, 1024
          %411 = vsyncadd [#allocation11], %s410
          %s412 = sshll.u32 [#allocation12], 4
          %s413 = int_to_ptr.vmem [resolvable:$true] %s412
          %418 = dma.hbm_to_vmem [thread:$0]  %s5, 1024, %s413, [#allocation11], 128, 128, 8
        $region28: #{tpu_custom_call.1} parent=11 // pred_fallthru
          _
        // Predicated region
        $region29: #{tpu_custom_call.1} parent=11 // pred_check
          %p419 = pneg %p191
        $region30: #{tpu_custom_call.1} parent=11 // pred_check_branch
          %421 = sbr.rel (%p419) target = $region32
        $region31: #{tpu_custom_call.1} parent=11 // pred_region
          %s423 = ssub.s32 16, 16
          %424 = vsyncadd [#allocation14], %s423
          %s426 = sshll.u32 [#allocation13], 4
          %s427 = int_to_ptr.vmem [resolvable:$true] %s426
          %429 = dma.hbm_to_vmem [thread:$0]  %s6, 16, %s427, [#allocation14]
        $region32: #{tpu_custom_call.1} parent=11 // pred_fallthru
          _
        // Predicated region
        $region33: #{tpu_custom_call.1} parent=11 // pred_check
          %p430 = pneg %p212
        $region34: #{tpu_custom_call.1} parent=11 // pred_check_branch
          %432 = sbr.rel (%p430) target = $region36
        $region35: #{tpu_custom_call.1} parent=11 // pred_region
          %s434 = ssub.s32 256, 256
          %435 = vsyncadd [#allocation14], %s434
          %s436 = sshll.u32 [#allocation15], 4
          %s437 = int_to_ptr.vmem [resolvable:$true] %s436
          %442 = dma.hbm_to_vmem [thread:$0]  %s7, 256, %s437, [#allocation14], 128, 128, 8
        $region36: #{tpu_custom_call.1} parent=11 // pred_fallthru
          _
        // Predicated region
        $region37: #{tpu_custom_call.1} parent=11 // pred_check
          %p443 = pneg %p233
        $region38: #{tpu_custom_call.1} parent=11 // pred_check_branch
          %445 = sbr.rel (%p443) target = $region40
        $region39: #{tpu_custom_call.1} parent=11 // pred_region
          %s447 = ssub.s32 16, 16
          %448 = vsyncadd [#allocation17], %s447
          %s450 = sshll.u32 [#allocation16], 4
          %s451 = int_to_ptr.vmem [resolvable:$true] %s450
          %453 = dma.hbm_to_vmem [thread:$0]  %s8, 16, %s451, [#allocation17]
        $region40: #{tpu_custom_call.1} parent=11 // pred_fallthru
          _
        // Predicated region
        $region41: #{tpu_custom_call.1} parent=11 // pred_check
          %p454 = pneg %p254
        $region42: #{tpu_custom_call.1} parent=11 // pred_check_branch
          %456 = sbr.rel (%p454) target = $region44
        $region43: #{tpu_custom_call.1} parent=11 // pred_region
          _
        $region44: #{tpu_custom_call.1} parent=11 // pred_fallthru
          _
        // Predicated region
        $region45: #{tpu_custom_call.1} parent=11 // pred_check
          %p457 = pneg %p275
        $region46: #{tpu_custom_call.1} parent=11 // pred_check_branch
          %459 = sbr.rel (%p457) target = $region48
        $region47: #{tpu_custom_call.1} parent=11 // pred_region
          _
        $region48: #{tpu_custom_call.1} parent=11 // pred_fallthru
          _
        // Predicated region
        $region49: #{tpu_custom_call.1} parent=11 // pred_check
          %p460 = pneg %p296
        $region50: #{tpu_custom_call.1} parent=11 // pred_check_branch
          %462 = sbr.rel (%p460) target = $region52
        $region51: #{tpu_custom_call.1} parent=11 // pred_region
          %s464 = ssub.s32 512, 512
          %465 = vsyncadd [#allocation17], %s464
          %s466 = sshll.u32 [#allocation18], 4
          %s467 = int_to_ptr.vmem [resolvable:$true] %s466
          %472 = dma.hbm_to_vmem [thread:$0]  %s11, 512, %s467, [#allocation17], 128, 128, 8
        $region52: #{tpu_custom_call.1} parent=11 // pred_fallthru
          _
        // Predicated region
        $region53: #{tpu_custom_call.1} parent=11 // pred_check
          %p473 = pneg %p317
        $region54: #{tpu_custom_call.1} parent=11 // pred_check_branch
          %475 = sbr.rel (%p473) target = $region56
        $region55: #{tpu_custom_call.1} parent=11 // pred_region
          _
        $region56: #{tpu_custom_call.1} parent=11 // pred_fallthru
          _
      $region12: #{tpu_custom_call.1} parent=5 // pred_fallthru
        _
      %p476 = scmp.lt.s32.totalorder %s34, 8
      // Predicated region
      $region57: #{tpu_custom_call.1} parent=5 // pred_check
        %p477 = pneg %p476
      $region58: #{tpu_custom_call.1} parent=5 // pred_check_branch
        %479 = sbr.rel (%p477) target = $region60
      $region59: #{tpu_custom_call.1} parent=5 // pred_region
        // Predicated region
        $region61: #{tpu_custom_call.1} parent=59 // pred_check
          %p480 = pneg %p54
        $region62: #{tpu_custom_call.1} parent=59 // pred_check_branch
          %482 = sbr.rel (%p480) target = $region64
        $region63: #{tpu_custom_call.1} parent=59 // pred_region
          %s483 = sand.u32 %s44, 1
          %s484 = scalar_lea.sflag [#allocation5], %s483
          %s485 = sand.u32 %s44, 1
          %s486 = smul.addr %s485, 2
          %s487 = scalar_lea.vmem [#allocation4], %s486
          %s489 = ssub.s32 32, 32
          %490 = vsyncadd %s484, %s489
          %s491 = smul.addr %s34, 32
          %s492 = scalar_lea.hbm %s0, %s491
          %s494 = sshll.u32 %s487, 4
          %s495 = int_to_ptr.vmem [resolvable:$true] %s494
          %497 = dma.hbm_to_vmem [thread:$0]  %s492, 32, %s495, %s484
        $region64: #{tpu_custom_call.1} parent=59 // pred_fallthru
          _
        // Predicated region
        $region65: #{tpu_custom_call.1} parent=59 // pred_check
          %p498 = pneg %p80
        $region66: #{tpu_custom_call.1} parent=59 // pred_check_branch
          %500 = sbr.rel (%p498) target = $region68
        $region67: #{tpu_custom_call.1} parent=59 // pred_region
          %s501 = sand.u32 %s34, 1
          %s502 = scalar_lea.sflag [#allocation8], %s501
          %s503 = sand.u32 %s70, 1
          %s504 = smul.addr %s503, 8
          %s505 = scalar_lea.vmem [#allocation7], %s504
          %s507 = ssub.s32 128, 128
          %508 = vsyncadd %s502, %s507
          %s509 = smul.addr %s34, 128
          %s510 = scalar_lea.hbm %s1, %s509
          %s512 = sshll.u32 %s505, 4
          %s513 = int_to_ptr.vmem [resolvable:$true] %s512
          %515 = dma.hbm_to_vmem [thread:$0]  %s510, 128, %s513, %s502
        $region68: #{tpu_custom_call.1} parent=59 // pred_fallthru
          _
      $region60: #{tpu_custom_call.1} parent=5 // pred_fallthru
        _
      %p516 = scmp.le.s32.totalorder 1, %s34
      %p517 = scmp.lt.s32.totalorder %s34, 9
      %p518 = pnand %p516, %p517
      %p519 = pneg %p518
      // Predicated region
      $region69: #{tpu_custom_call.1} parent=5 // pred_check
        _
      $region70: #{tpu_custom_call.1} parent=5 // pred_check_branch
        %521 = sbr.rel (%p518) target = $region72
      $region71: #{tpu_custom_call.1} parent=5 // pred_region
        %s522 = ssub.s32 %s34, 1
        %s523 = sand.u32 %s47, 1
        %s524 = scalar_lea.sflag [#allocation5], %s523
        %s525 = sand.u32 %s47, 1
        %s526 = smul.addr %s525, 2
        %s527 = scalar_lea.vmem [#allocation4], %s526
        // Predicated region
        $region73: #{tpu_custom_call.1} parent=71 // pred_check
          %p528 = pneg %p60
        $region74: #{tpu_custom_call.1} parent=71 // pred_check_branch
          %530 = sbr.rel (%p528) target = $region76
        $region75: #{tpu_custom_call.1} parent=71 // pred_region
          %531 = dma.done %s524, 32
        $region76: #{tpu_custom_call.1} parent=71 // pred_fallthru
          _
        %s532 = sand.u32 %s39, 1
        %s533 = scalar_lea.sflag [#allocation8], %s532
        %s534 = sand.u32 %s73, 1
        %s535 = smul.addr %s534, 8
        %s536 = scalar_lea.vmem [#allocation7], %s535
        // Predicated region
        $region77: #{tpu_custom_call.1} parent=71 // pred_check
          %p537 = pneg %p86
        $region78: #{tpu_custom_call.1} parent=71 // pred_check_branch
          %539 = sbr.rel (%p537) target = $region80
        $region79: #{tpu_custom_call.1} parent=71 // pred_region
          %540 = dma.done %s533, 128
        $region80: #{tpu_custom_call.1} parent=71 // pred_fallthru
          _
        // Predicated region
        $region81: #{tpu_custom_call.1} parent=71 // pred_check
          %p541 = pneg %p128
        $region82: #{tpu_custom_call.1} parent=71 // pred_check_branch
          %543 = sbr.rel (%p541) target = $region84
        $region83: #{tpu_custom_call.1} parent=71 // pred_region
          %544 = dma.done [#allocation8], 256
        $region84: #{tpu_custom_call.1} parent=71 // pred_fallthru
          _
        // Predicated region
        $region85: #{tpu_custom_call.1} parent=71 // pred_check
          %p545 = pneg %p149
        $region86: #{tpu_custom_call.1} parent=71 // pred_check_branch
          %547 = sbr.rel (%p545) target = $region88
        $region87: #{tpu_custom_call.1} parent=71 // pred_region
          %548 = dma.done [#allocation11], 16
        $region88: #{tpu_custom_call.1} parent=71 // pred_fallthru
          _
        // Predicated region
        $region89: #{tpu_custom_call.1} parent=71 // pred_check
          %p549 = pneg %p170
        $region90: #{tpu_custom_call.1} parent=71 // pred_check_branch
          %551 = sbr.rel (%p549) target = $region92
        $region91: #{tpu_custom_call.1} parent=71 // pred_region
          %552 = dma.done [#allocation11], 1024
        $region92: #{tpu_custom_call.1} parent=71 // pred_fallthru
          _
        // Predicated region
        $region93: #{tpu_custom_call.1} parent=71 // pred_check
          %p553 = pneg %p191
        $region94: #{tpu_custom_call.1} parent=71 // pred_check_branch
          %555 = sbr.rel (%p553) target = $region96
        $region95: #{tpu_custom_call.1} parent=71 // pred_region
          %556 = dma.done [#allocation14], 16
        $region96: #{tpu_custom_call.1} parent=71 // pred_fallthru
          _
        // Predicated region
        $region97: #{tpu_custom_call.1} parent=71 // pred_check
          %p557 = pneg %p212
        $region98: #{tpu_custom_call.1} parent=71 // pred_check_branch
          %559 = sbr.rel (%p557) target = $region100
        $region99: #{tpu_custom_call.1} parent=71 // pred_region
          %560 = dma.done [#allocation14], 256
        $region100: #{tpu_custom_call.1} parent=71 // pred_fallthru
          _
        // Predicated region
        $region101: #{tpu_custom_call.1} parent=71 // pred_check
          %p561 = pneg %p233
        $region102: #{tpu_custom_call.1} parent=71 // pred_check_branch
          %563 = sbr.rel (%p561) target = $region104
        $region103: #{tpu_custom_call.1} parent=71 // pred_region
          %564 = dma.done [#allocation17], 16
        $region104: #{tpu_custom_call.1} parent=71 // pred_fallthru
          _
        // Predicated region
        $region105: #{tpu_custom_call.1} parent=71 // pred_check
          %p565 = pneg %p296
        $region106: #{tpu_custom_call.1} parent=71 // pred_check_branch
          %567 = sbr.rel (%p565) target = $region108
        $region107: #{tpu_custom_call.1} parent=71 // pred_region
          %568 = dma.done [#allocation17], 512
        $region108: #{tpu_custom_call.1} parent=71 // pred_fallthru
          _
        %s569 = sand.u32 %s47, 1
        %s570 = scalar_lea.sflag [#allocation5], %s569
        %s571 = sand.u32 %s47, 1
        %s572 = smul.addr %s571, 2
        %s573 = scalar_lea.vmem [#allocation4], %s572
        %p574 = pneg %p60
        %p575 = pneg %p57
        %s576 = sand.u32 %s39, 1
        %s577 = scalar_lea.sflag [#allocation8], %s576
        %s578 = sand.u32 %s73, 1
        %s579 = smul.addr %s578, 8
        %s580 = scalar_lea.vmem [#allocation7], %s579
        %p581 = pneg %p86
        %p582 = pneg %p83
        %p583 = pneg %p107
        %p584 = pneg %p104
        %p585 = pneg %p128
        %p586 = pneg %p125
        %p587 = pneg %p149
        %p588 = pneg %p146
        %p589 = pneg %p170
        %p590 = pneg %p167
        %p591 = pneg %p191
        %p592 = pneg %p188
        %p593 = pneg %p212
        %p594 = pneg %p209
        %p595 = pneg %p233
        %p596 = pneg %p230
        %p597 = pneg %p254
        %p598 = pneg %p251
        %p599 = pneg %p275
        %p600 = pneg %p272
        %p601 = pneg %p296
        %p602 = pneg %p293
        %p603 = pneg %p317
        %p604 = pneg %p314
        %p605 = pneg %p343
        %p606 = pneg %p340
        %s607 = sand.u32 %s330, 1
        %s608 = scalar_lea.sflag [#allocation6], %s607
        %s609 = sand.u32 %s330, 1
        %s610 = smul.addr %s609, 8
        %s611 = scalar_lea.vmem [#allocation19], %s610
        %p612 = pneg %p364
        %p613 = pneg %p361
        %p614 = scmp.eq.s32.totalorder %s39, 0
        // Predicated region
        $region109: #{tpu_custom_call.1} parent=71 // pred_check
          %p615 = pneg %p614
        $region110: #{tpu_custom_call.1} parent=71 // pred_check_branch
          %617 = sbr.rel (%p615) target = $region112
        $region111: #{tpu_custom_call.1} parent=71 // pred_region
          %v618 = vld [vmem:[%s2] sm:$0x3]
          %vm619 = vcmask 254976
          %620 = vst.msk [vmem:[#allocation20] sm:$0x3] %vm619, %v618
        $region112: #{tpu_custom_call.1} parent=71 // pred_fallthru
          _
        %v621 = vld [vmem:[#allocation20] sm:$0x3]
        %v622 = vld [vmem:[%s527] sm:$0x3]
        %v623 = vld [vmem:[#allocation9] sm:$0xff]
        %v624 = vld [vmem:[#allocation9 + $0x8] sm:$0xff]
        %v625 = vld [vmem:[#allocation10] sm:$0x1]
        %v627 = vlaneseq
        %v628 = vshrl.u32 %v627, 7
        %v629 = vsub.s32 0, %v628
        %v630 = vrot.slane %v625, %v629
        %vm632 = vcmask 130048
        %v634 = vsel %vm632, %v622, 0
        %636 = vmatprep.subr.mxu0 0.0
        %637 = vmatpush1.msra.mxu0 %v623
        %638 = vmatprep.subr.mxu0 0.0
        %639 = vmatpush1.msra.mxu0 %v624
        %640 = vmatprep.subr.mxu0 0.0
        %641 = vmatpush1.msra.mxu0 0.0
        %642 = vmatprep.subr.mxu0 0.0
        %643 = vmatpush1.msra.mxu0 0.0
        %644 = vmatprep.subr.mxu0 0.0
        %645 = vmatpush1.msra.mxu0 0.0
        %646 = vmatprep.subr.mxu0 0.0
        %647 = vmatpush1.msra.mxu0 0.0
        %648 = vmatprep.subr.mxu0 0.0
        %649 = vmatpush1.msra.mxu0 0.0
        %650 = vmatprep.subr.mxu0 0.0
        %651 = vmatpush1.msra.mxu0 0.0
        %652 = vmatprep.subr.mxu0 0.0
        %653 = vmatpush1.msra.mxu0 0.0
        %654 = vmatprep.subr.mxu0 0.0
        %655 = vmatpush1.msra.mxu0 0.0
        %656 = vmatprep.subr.mxu0 0.0
        %657 = vmatpush1.msra.mxu0 0.0
        %658 = vmatprep.subr.mxu0 0.0
        %659 = vmatpush1.msra.mxu0 0.0
        %660 = vmatprep.subr.mxu0 0.0
        %661 = vmatpush1.msra.mxu0 0.0
        %662 = vmatprep.subr.mxu0 0.0
        %663 = vmatpush1.msra.mxu0 0.0
        %664 = vmatprep.subr.mxu0 0.0
        %665 = vmatpush1.msra.mxu0 0.0
        %666 = vmatprep.subr.mxu0 0.0
        %667 = vmatpush1.msra.mxu0 0.0
        %668 = vmatprep.subr.mxu0 0.0
        %669 = vmatpush1.msra.mxu0 0.0
        %670 = vmatprep.subr.mxu0 0.0
        %671 = vmatpush1.msra.mxu0 0.0
        %672 = vmatprep.subr.mxu0 0.0
        %673 = vmatpush1.msra.mxu0 0.0
        %674 = vmatprep.subr.mxu0 0.0
        %675 = vmatpush1.msra.mxu0 0.0
        %676 = vmatprep.subr.mxu0 0.0
        %677 = vmatpush1.msra.mxu0 0.0
        %678 = vmatprep.subr.mxu0 0.0
        %679 = vmatpush1.msra.mxu0 0.0
        %680 = vmatprep.subr.mxu0 0.0
        %681 = vmatpush1.msra.mxu0 0.0
        %682 = vmatprep.subr.mxu0 0.0
        %683 = vmatpush1.msra.mxu0 0.0
        %684 = vmatprep.subr.mxu0 0.0
        %685 = vmatpush1.msra.mxu0 0.0
        %686 = vmatprep.subr.mxu0 0.0
        %687 = vmatpush1.msra.mxu0 0.0
        %688 = vmatprep.subr.mxu0 0.0
        %689 = vmatpush1.msra.mxu0 0.0
        %690 = vmatprep.subr.mxu0 0.0
        %691 = vmatpush1.msra.mxu0 0.0
        %692 = vmatprep.subr.mxu0 0.0
        %693 = vmatpush1.msra.mxu0 0.0
        %694 = vmatprep.subr.mxu0 0.0
        %695 = vmatpush1.msra.mxu0 0.0
        %696 = vmatprep.subr.mxu0 0.0
        %697 = vmatpush1.msra.mxu0 0.0
        %698 = vmatprep.subr.mxu0 0.0
        %699 = vmatpush1.msra.mxu0 0.0
        %700 = vmatprep.mubr.f32.mxu0 0.0
        %701 = vmatmul.mubr.f32.gmra.mrb[0].mxu0 %v634
        %v702 = vpop.f32.mrb[0].mxu0
        %v703 = vadd.f32 %v630, %v702
        %v704 = vpop.f32.mrb[0].mxu0
        %705 = vdwg.mxu0
        %v706 = vmax.f32 %v703, 0.0
        %vm707 = vcmask 254976
        %708 = vst.msk [vmem:[#allocation2] sm:$0x3] %vm707, %v706
        %710 = vrot.lane.b32.xlu0 %v621, 32
        %v711 = vpop.permute.xlu0 %710
        %vm713 = vcmask 517376
        %714 = vst.msk [vmem:[#allocation2] sm:$0x3] %vm713, %v711
        %v715 = vld [vmem:[#allocation2] sm:$0x3]
        %v716 = vld [vmem:[#allocation12] sm:$0xff]
        %v717 = vld [vmem:[#allocation12 + $0x8] sm:$0xff]
        %v718 = vld [vmem:[#allocation12 + $0x10] sm:$0xff]
        %v719 = vld [vmem:[#allocation12 + $0x18] sm:$0xff]
        %v720 = vld [vmem:[#allocation12 + $0x20] sm:$0xff]
        %v721 = vld [vmem:[#allocation12 + $0x28] sm:$0xff]
        %v722 = vld [vmem:[#allocation12 + $0x30] sm:$0xff]
        %v723 = vld [vmem:[#allocation12 + $0x38] sm:$0xff]
        %v724 = vld [vmem:[#allocation13] sm:$0x1]
        %v726 = vlaneseq
        %v727 = vshrl.u32 %v726, 7
        %v728 = vsub.s32 0, %v727
        %v729 = vrot.slane %v724, %v728
        %vm731 = vcmask 523264
        %v733 = vsel %vm731, %v715, 0
        %735 = vmatprep.subr.mxu0 0.0
        %736 = vmatpush1.msra.mxu0 %v716
        %737 = vmatprep.subr.mxu0 0.0
        %738 = vmatpush1.msra.mxu0 %v717
        %739 = vmatprep.subr.mxu0 0.0
        %740 = vmatpush1.msra.mxu0 %v718
        %741 = vmatprep.subr.mxu0 0.0
        %742 = vmatpush1.msra.mxu0 %v719
        %743 = vmatprep.subr.mxu0 0.0
        %744 = vmatpush1.msra.mxu0 %v720
        %745 = vmatprep.subr.mxu0 0.0
        %746 = vmatpush1.msra.mxu0 %v721
        %747 = vmatprep.subr.mxu0 0.0
        %748 = vmatpush1.msra.mxu0 %v722
        %749 = vmatprep.subr.mxu0 0.0
        %750 = vmatpush1.msra.mxu0 %v723
        %751 = vmatprep.subr.mxu0 0.0
        %752 = vmatpush1.msra.mxu0 0.0
        %753 = vmatprep.subr.mxu0 0.0
        %754 = vmatpush1.msra.mxu0 0.0
        %755 = vmatprep.subr.mxu0 0.0
        %756 = vmatpush1.msra.mxu0 0.0
        %757 = vmatprep.subr.mxu0 0.0
        %758 = vmatpush1.msra.mxu0 0.0
        %759 = vmatprep.subr.mxu0 0.0
        %760 = vmatpush1.msra.mxu0 0.0
        %761 = vmatprep.subr.mxu0 0.0
        %762 = vmatpush1.msra.mxu0 0.0
        %763 = vmatprep.subr.mxu0 0.0
        %764 = vmatpush1.msra.mxu0 0.0
        %765 = vmatprep.subr.mxu0 0.0
        %766 = vmatpush1.msra.mxu0 0.0
        %767 = vmatprep.subr.mxu0 0.0
        %768 = vmatpush1.msra.mxu0 0.0
        %769 = vmatprep.subr.mxu0 0.0
        %770 = vmatpush1.msra.mxu0 0.0
        %771 = vmatprep.subr.mxu0 0.0
        %772 = vmatpush1.msra.mxu0 0.0
        %773 = vmatprep.subr.mxu0 0.0
        %774 = vmatpush1.msra.mxu0 0.0
        %775 = vmatprep.subr.mxu0 0.0
        %776 = vmatpush1.msra.mxu0 0.0
        %777 = vmatprep.subr.mxu0 0.0
        %778 = vmatpush1.msra.mxu0 0.0
        %779 = vmatprep.subr.mxu0 0.0
        %780 = vmatpush1.msra.mxu0 0.0
        %781 = vmatprep.subr.mxu0 0.0
        %782 = vmatpush1.msra.mxu0 0.0
        %783 = vmatprep.subr.mxu0 0.0
        %784 = vmatpush1.msra.mxu0 0.0
        %785 = vmatprep.subr.mxu0 0.0
        %786 = vmatpush1.msra.mxu0 0.0
        %787 = vmatprep.subr.mxu0 0.0
        %788 = vmatpush1.msra.mxu0 0.0
        %789 = vmatprep.subr.mxu0 0.0
        %790 = vmatpush1.msra.mxu0 0.0
        %791 = vmatprep.subr.mxu0 0.0
        %792 = vmatpush1.msra.mxu0 0.0
        %793 = vmatprep.subr.mxu0 0.0
        %794 = vmatpush1.msra.mxu0 0.0
        %795 = vmatprep.subr.mxu0 0.0
        %796 = vmatpush1.msra.mxu0 0.0
        %797 = vmatprep.subr.mxu0 0.0
        %798 = vmatpush1.msra.mxu0 0.0
        %799 = vmatprep.mubr.f32.mxu0 0.0
        %800 = vmatmul.mubr.f32.gmra.mrb[0].mxu0 %v733
        %v801 = vpop.f32.mrb[0].mxu0
        %v802 = vadd.f32 %v729, %v801
        %v803 = vpop.f32.mrb[0].mxu0
        %804 = vdwg.mxu0
        %v805 = vxor.u32 %v802, 2147483648
        %v806 = vmul.f32 %v805, 1.442695
        %v807 = vpow.pop %v806
        %v808 = vadd.f32 %v807, 1.0
        %v809 = vrcp.pop %v808
        %v810 = vmul.f32 1.0, %v809
        %812 = vrot.lane.b32.xlu0 %v802, 32
        %v813 = vpop.permute.xlu0 %812
        %v815 = vmul.f32 %v810, %v813
        %817 = vrot.lane.b32.xlu0 %v815, 64
        %v818 = vpop.permute.xlu0 %817
        %v820 = vadd.f32 %v802, %v818
        %v821 = vtanh.pop %v820
        %v822 = vsub.f32 1.0, %v810
        %824 = vrot.lane.b32.xlu0 %v821, 96
        %v825 = vpop.permute.xlu0 %824
        %v827 = vmul.f32 %v822, %v825
        %v828 = vmul.f32 %v810, %v711
        %v829 = vadd.f32 %v827, %v828
        %831 = vrot.lane.b32.xlu0 %v829, 96
        %v832 = vpop.permute.xlu0 %831
        %834 = vst.msk [vmem:[#allocation20] sm:$0x3] %vm707, %v832
        %v835 = vld [vmem:[%s9] sm:$0xff]
        %v836 = vld [vmem:[%s9 + $0x8] sm:$0xff]
        %v837 = vld [vmem:[%s9 + $0x10] sm:$0xff]
        %v838 = vld [vmem:[%s9 + $0x18] sm:$0xff]
        %v839 = vld [vmem:[%s10] sm:$0x1]
        %v841 = vlaneseq
        %v842 = vshrl.u32 %v841, 7
        %v843 = vsub.s32 0, %v842
        %v844 = vrot.slane %v839, %v843
        %vm846 = vcmask 261120
        %v847 = vsel %vm846, %v832, 0
        %849 = vmatprep.subr.mxu0 0.0
        %850 = vmatpush1.msra.mxu0 %v835
        %851 = vmatprep.subr.mxu0 0.0
        %852 = vmatpush1.msra.mxu0 %v836
        %853 = vmatprep.subr.mxu0 0.0
        %854 = vmatpush1.msra.mxu0 %v837
        %855 = vmatprep.subr.mxu0 0.0
        %856 = vmatpush1.msra.mxu0 %v838
        %857 = vmatprep.subr.mxu0 0.0
        %858 = vmatpush1.msra.mxu0 0.0
        %859 = vmatprep.subr.mxu0 0.0
        %860 = vmatpush1.msra.mxu0 0.0
        %861 = vmatprep.subr.mxu0 0.0
        %862 = vmatpush1.msra.mxu0 0.0
        %863 = vmatprep.subr.mxu0 0.0
        %864 = vmatpush1.msra.mxu0 0.0
        %865 = vmatprep.subr.mxu0 0.0
        %866 = vmatpush1.msra.mxu0 0.0
        %867 = vmatprep.subr.mxu0 0.0
        %868 = vmatpush1.msra.mxu0 0.0
        %869 = vmatprep.subr.mxu0 0.0
        %870 = vmatpush1.msra.mxu0 0.0
        %871 = vmatprep.subr.mxu0 0.0
        %872 = vmatpush1.msra.mxu0 0.0
        %873 = vmatprep.subr.mxu0 0.0
        %874 = vmatpush1.msra.mxu0 0.0
        %875 = vmatprep.subr.mxu0 0.0
        %876 = vmatpush1.msra.mxu0 0.0
        %877 = vmatprep.subr.mxu0 0.0
        %878 = vmatpush1.msra.mxu0 0.0
        %879 = vmatprep.subr.mxu0 0.0
        %880 = vmatpush1.msra.mxu0 0.0
        %881 = vmatprep.subr.mxu0 0.0
        %882 = vmatpush1.msra.mxu0 0.0
        %883 = vmatprep.subr.mxu0 0.0
        %884 = vmatpush1.msra.mxu0 0.0
        %885 = vmatprep.subr.mxu0 0.0
        %886 = vmatpush1.msra.mxu0 0.0
        %887 = vmatprep.subr.mxu0 0.0
        %888 = vmatpush1.msra.mxu0 0.0
        %889 = vmatprep.subr.mxu0 0.0
        %890 = vmatpush1.msra.mxu0 0.0
        %891 = vmatprep.subr.mxu0 0.0
        %892 = vmatpush1.msra.mxu0 0.0
        %893 = vmatprep.subr.mxu0 0.0
        %894 = vmatpush1.msra.mxu0 0.0
        %895 = vmatprep.subr.mxu0 0.0
        %896 = vmatpush1.msra.mxu0 0.0
        %897 = vmatprep.subr.mxu0 0.0
        %898 = vmatpush1.msra.mxu0 0.0
        %899 = vmatprep.subr.mxu0 0.0
        %900 = vmatpush1.msra.mxu0 0.0
        %901 = vmatprep.subr.mxu0 0.0
        %902 = vmatpush1.msra.mxu0 0.0
        %903 = vmatprep.subr.mxu0 0.0
        %904 = vmatpush1.msra.mxu0 0.0
        %905 = vmatprep.subr.mxu0 0.0
        %906 = vmatpush1.msra.mxu0 0.0
        %907 = vmatprep.subr.mxu0 0.0
        %908 = vmatpush1.msra.mxu0 0.0
        %909 = vmatprep.subr.mxu0 0.0
        %910 = vmatpush1.msra.mxu0 0.0
        %911 = vmatprep.subr.mxu0 0.0
        %912 = vmatpush1.msra.mxu0 0.0
        %913 = vmatprep.mubr.f32.mxu0 0.0
        %914 = vmatmul.mubr.f32.gmra.mrb[0].mxu0 %v847
        %v915 = vpop.f32.mrb[0].mxu0
        %v916 = vadd.f32 %v844, %v915
        %v917 = vpop.f32.mrb[0].mxu0
        %918 = vdwg.mxu0
        %919 = vst.msk [vmem:[#allocation3] sm:$0x3] %vm707, %v916
        %920 = vst.msk [vmem:[#allocation3 + $0x2] sm:$0x3] %vm707, %v916
        %921 = vst.msk [vmem:[#allocation3 + $0x4] sm:$0x3] %vm707, %v916
        %922 = vst.msk [vmem:[#allocation3 + $0x6] sm:$0x3] %vm707, %v916
        %v923 = vld [vmem:[%s536] sm:$0xff]
        %v924 = vld [vmem:[#allocation15] sm:$0xff]
        %v925 = vld [vmem:[#allocation15 + $0x8] sm:$0xff]
        %v926 = vld [vmem:[#allocation16] sm:$0x1]
        %v928 = vlaneseq
        %v929 = vshrl.u32 %v928, 7
        %v930 = vsub.s32 0, %v929
        %v931 = vrot.slane %v926, %v930
        %v934 = vsel %vm632, %v923, 0
        %936 = vmatprep.subr.mxu0 0.0
        %937 = vmatpush1.msra.mxu0 %v924
        %938 = vmatprep.subr.mxu0 0.0
        %939 = vmatpush1.msra.mxu0 %v925
        %940 = vmatprep.subr.mxu0 0.0
        %941 = vmatpush1.msra.mxu0 0.0
        %942 = vmatprep.subr.mxu0 0.0
        %943 = vmatpush1.msra.mxu0 0.0
        %944 = vmatprep.subr.mxu0 0.0
        %945 = vmatpush1.msra.mxu0 0.0
        %946 = vmatprep.subr.mxu0 0.0
        %947 = vmatpush1.msra.mxu0 0.0
        %948 = vmatprep.subr.mxu0 0.0
        %949 = vmatpush1.msra.mxu0 0.0
        %950 = vmatprep.subr.mxu0 0.0
        %951 = vmatpush1.msra.mxu0 0.0
        %952 = vmatprep.subr.mxu0 0.0
        %953 = vmatpush1.msra.mxu0 0.0
        %954 = vmatprep.subr.mxu0 0.0
        %955 = vmatpush1.msra.mxu0 0.0
        %956 = vmatprep.subr.mxu0 0.0
        %957 = vmatpush1.msra.mxu0 0.0
        %958 = vmatprep.subr.mxu0 0.0
        %959 = vmatpush1.msra.mxu0 0.0
        %960 = vmatprep.subr.mxu0 0.0
        %961 = vmatpush1.msra.mxu0 0.0
        %962 = vmatprep.subr.mxu0 0.0
        %963 = vmatpush1.msra.mxu0 0.0
        %964 = vmatprep.subr.mxu0 0.0
        %965 = vmatpush1.msra.mxu0 0.0
        %966 = vmatprep.subr.mxu0 0.0
        %967 = vmatpush1.msra.mxu0 0.0
        %968 = vmatprep.subr.mxu0 0.0
        %969 = vmatpush1.msra.mxu0 0.0
        %970 = vmatprep.subr.mxu0 0.0
        %971 = vmatpush1.msra.mxu0 0.0
        %972 = vmatprep.subr.mxu0 0.0
        %973 = vmatpush1.msra.mxu0 0.0
        %974 = vmatprep.subr.mxu0 0.0
        %975 = vmatpush1.msra.mxu0 0.0
        %976 = vmatprep.subr.mxu0 0.0
        %977 = vmatpush1.msra.mxu0 0.0
        %978 = vmatprep.subr.mxu0 0.0
        %979 = vmatpush1.msra.mxu0 0.0
        %980 = vmatprep.subr.mxu0 0.0
        %981 = vmatpush1.msra.mxu0 0.0
        %982 = vmatprep.subr.mxu0 0.0
        %983 = vmatpush1.msra.mxu0 0.0
        %984 = vmatprep.subr.mxu0 0.0
        %985 = vmatpush1.msra.mxu0 0.0
        %986 = vmatprep.subr.mxu0 0.0
        %987 = vmatpush1.msra.mxu0 0.0
        %988 = vmatprep.subr.mxu0 0.0
        %989 = vmatpush1.msra.mxu0 0.0
        %990 = vmatprep.subr.mxu0 0.0
        %991 = vmatpush1.msra.mxu0 0.0
        %992 = vmatprep.subr.mxu0 0.0
        %993 = vmatpush1.msra.mxu0 0.0
        %994 = vmatprep.subr.mxu0 0.0
        %995 = vmatpush1.msra.mxu0 0.0
        %996 = vmatprep.subr.mxu0 0.0
        %997 = vmatpush1.msra.mxu0 0.0
        %998 = vmatprep.subr.mxu0 0.0
        %999 = vmatpush1.msra.mxu0 0.0
        %1000 = vmatprep.mubr.f32.mxu0 0.0
        %1001 = vmatmul.mubr.f32.gmra.mrb[0].mxu0 %v934
        %v1002 = vpop.f32.mrb[0].mxu0
        %v1003 = vadd.f32 %v931, %v1002
        %v1004 = vpop.f32.mrb[0].mxu0
        %1005 = vdwg.mxu0
        %v1006 = vld [vmem:[#allocation3] sm:$0xff]
        %v1007 = vadd.f32 %v1003, %v1006
        %v1008 = vtanh.pop %v1007
        %v1009 = vld [vmem:[#allocation18] sm:$0xff]
        %v1010 = vld [vmem:[#allocation18 + $0x8] sm:$0xff]
        %v1011 = vld [vmem:[#allocation18 + $0x10] sm:$0xff]
        %v1012 = vld [vmem:[#allocation18 + $0x18] sm:$0xff]
        %v1013 = vld [vmem:[%s12] sm:$0x1]
        %v1015 = vlaneseq
        %v1016 = vshrl.u32 %v1015, 7
        %v1017 = vsub.s32 0, %v1016
        %v1018 = vrot.slane %v1013, %v1017
        %v1021 = vsel %vm846, %v1008, 0
        %1023 = vmatprep.subr.mxu0 0.0
        %1024 = vmatpush1.msra.mxu0 %v1009
        %1025 = vmatprep.subr.mxu0 0.0
        %1026 = vmatpush1.msra.mxu0 %v1010
        %1027 = vmatprep.subr.mxu0 0.0
        %1028 = vmatpush1.msra.mxu0 %v1011
        %1029 = vmatprep.subr.mxu0 0.0
        %1030 = vmatpush1.msra.mxu0 %v1012
        %1031 = vmatprep.subr.mxu0 0.0
        %1032 = vmatpush1.msra.mxu0 0.0
        %1033 = vmatprep.subr.mxu0 0.0
        %1034 = vmatpush1.msra.mxu0 0.0
        %1035 = vmatprep.subr.mxu0 0.0
        %1036 = vmatpush1.msra.mxu0 0.0
        %1037 = vmatprep.subr.mxu0 0.0
        %1038 = vmatpush1.msra.mxu0 0.0
        %1039 = vmatprep.subr.mxu0 0.0
        %1040 = vmatpush1.msra.mxu0 0.0
        %1041 = vmatprep.subr.mxu0 0.0
        %1042 = vmatpush1.msra.mxu0 0.0
        %1043 = vmatprep.subr.mxu0 0.0
        %1044 = vmatpush1.msra.mxu0 0.0
        %1045 = vmatprep.subr.mxu0 0.0
        %1046 = vmatpush1.msra.mxu0 0.0
        %1047 = vmatprep.subr.mxu0 0.0
        %1048 = vmatpush1.msra.mxu0 0.0
        %1049 = vmatprep.subr.mxu0 0.0
        %1050 = vmatpush1.msra.mxu0 0.0
        %1051 = vmatprep.subr.mxu0 0.0
        %1052 = vmatpush1.msra.mxu0 0.0
        %1053 = vmatprep.subr.mxu0 0.0
        %1054 = vmatpush1.msra.mxu0 0.0
        %1055 = vmatprep.subr.mxu0 0.0
        %1056 = vmatpush1.msra.mxu0 0.0
        %1057 = vmatprep.subr.mxu0 0.0
        %1058 = vmatpush1.msra.mxu0 0.0
        %1059 = vmatprep.subr.mxu0 0.0
        %1060 = vmatpush1.msra.mxu0 0.0
        %1061 = vmatprep.subr.mxu0 0.0
        %1062 = vmatpush1.msra.mxu0 0.0
        %1063 = vmatprep.subr.mxu0 0.0
        %1064 = vmatpush1.msra.mxu0 0.0
        %1065 = vmatprep.subr.mxu0 0.0
        %1066 = vmatpush1.msra.mxu0 0.0
        %1067 = vmatprep.subr.mxu0 0.0
        %1068 = vmatpush1.msra.mxu0 0.0
        %1069 = vmatprep.subr.mxu0 0.0
        %1070 = vmatpush1.msra.mxu0 0.0
        %1071 = vmatprep.subr.mxu0 0.0
        %1072 = vmatpush1.msra.mxu0 0.0
        %1073 = vmatprep.subr.mxu0 0.0
        %1074 = vmatpush1.msra.mxu0 0.0
        %1075 = vmatprep.subr.mxu0 0.0
        %1076 = vmatpush1.msra.mxu0 0.0
        %1077 = vmatprep.subr.mxu0 0.0
        %1078 = vmatpush1.msra.mxu0 0.0
        %1079 = vmatprep.subr.mxu0 0.0
        %1080 = vmatpush1.msra.mxu0 0.0
        %1081 = vmatprep.subr.mxu0 0.0
        %1082 = vmatpush1.msra.mxu0 0.0
        %1083 = vmatprep.subr.mxu0 0.0
        %1084 = vmatpush1.msra.mxu0 0.0
        %1085 = vmatprep.subr.mxu0 0.0
        %1086 = vmatpush1.msra.mxu0 0.0
        %1087 = vmatprep.mubr.f32.mxu0 0.0
        %1088 = vmatmul.mubr.f32.gmra.mrb[0].mxu0 %v1021
        %v1089 = vpop.f32.mrb[0].mxu0
        %v1090 = vadd.f32 %v1018, %v1089
        %v1091 = vpop.f32.mrb[0].mxu0
        %1092 = vdwg.mxu0
        %1093 = vst [vmem:[%s611] sm:$0xff] %v1090
        %s1094 = sand.u32 %s330, 1
        %s1095 = scalar_lea.sflag [#allocation6], %s1094
        %s1096 = sand.u32 %s330, 1
        %s1097 = smul.addr %s1096, 8
        %s1098 = scalar_lea.vmem [#allocation19], %s1097
        // Predicated region
        $region113: #{tpu_custom_call.1} parent=71 // pred_check
          %p1099 = pneg %p340
        $region114: #{tpu_custom_call.1} parent=71 // pred_check_branch
          %1101 = sbr.rel (%p1099) target = $region116
        $region115: #{tpu_custom_call.1} parent=71 // pred_region
          %s1103 = ssub.s32 128, 128
          %1104 = vsyncadd %s1095, %s1103
          %s1105 = smul.addr %s39, 128
          %s1106 = scalar_lea.hbm %s13, %s1105
          %s1108 = sshll.u32 %s1098, 4
          %s1109 = int_to_ptr.vmem [resolvable:$true] %s1108
          %1111 = dma.vmem_to_hbm [thread:$0]  %s1109, 128, %s1106, %s1095
        $region116: #{tpu_custom_call.1} parent=71 // pred_fallthru
          _
        // Predicated region
        $region117: #{tpu_custom_call.1} parent=71 // pred_check
          %p1112 = pneg %p361
        $region118: #{tpu_custom_call.1} parent=71 // pred_check_branch
          %1114 = sbr.rel (%p1112) target = $region120
        $region119: #{tpu_custom_call.1} parent=71 // pred_region
          %s1116 = ssub.s32 32, 32
          %1117 = vsyncadd [#allocation21], %s1116
          %s1119 = sshll.u32 [#allocation20], 4
          %s1120 = int_to_ptr.vmem [resolvable:$true] %s1119
          %1122 = dma.vmem_to_hbm [thread:$0]  %s1120, 32, %s14, [#allocation21]
        $region120: #{tpu_custom_call.1} parent=71 // pred_fallthru
          _
        // Predicated region
        $region121: #{tpu_custom_call.1} parent=71 // pred_check
          %p1123 = pneg %p361
        $region122: #{tpu_custom_call.1} parent=71 // pred_check_branch
          %1125 = sbr.rel (%p1123) target = $region124
        $region123: #{tpu_custom_call.1} parent=71 // pred_region
          %1126 = dma.done [#allocation21], 32
        $region124: #{tpu_custom_call.1} parent=71 // pred_fallthru
          _
      $region72: #{tpu_custom_call.1} parent=5 // pred_fallthru
        _
      %p1127 = scmp.le.s32.totalorder 2, %s34
      // Predicated region
      $region125: #{tpu_custom_call.1} parent=5 // pred_check
        %p1128 = pneg %p1127
      $region126: #{tpu_custom_call.1} parent=5 // pred_check_branch
        %1130 = sbr.rel (%p1128) target = $region128
      $region127: #{tpu_custom_call.1} parent=5 // pred_region
        %s1131 = ssub.s32 %s34, 2
        // Predicated region
        $region129: #{tpu_custom_call.1} parent=127 // pred_check
          %p1132 = pneg %p346
        $region130: #{tpu_custom_call.1} parent=127 // pred_check_branch
          %1134 = sbr.rel (%p1132) target = $region132
        $region131: #{tpu_custom_call.1} parent=127 // pred_region
          %s1135 = sand.u32 %s331, 1
          %s1136 = scalar_lea.sflag [#allocation6], %s1135
          %s1137 = sand.u32 %s331, 1
          %s1138 = smul.addr %s1137, 8
          %s1139 = scalar_lea.vmem [#allocation19], %s1138
          %1140 = dma.done %s1136, 128
        $region132: #{tpu_custom_call.1} parent=127 // pred_fallthru
          _
      $region128: #{tpu_custom_call.1} parent=5 // pred_fallthru
        _
    $region6: #{tpu_custom_call.1} parent=1 // loop_footer
      %s38 = sadd.s32 1, %s34
    $region7: #{tpu_custom_call.1} parent=1 // loop_footer_branch
      %33 = sbr.rel target = $region3
    $region8: #{tpu_custom_call.1} parent=1 // loop_exit
      _
    %1141 = vsyncpa [#allocation5], 1
    %s1142 = scalar_lea.sflag [#allocation5], 1
    %1143 = vsyncpa %s1142, 1
    %1144 = vsyncpa [#allocation8], 1
    %s1145 = scalar_lea.sflag [#allocation8], 1
    %1146 = vsyncpa %s1145, 1
    %1147 = vsyncpa [#allocation11], 1
    %1148 = vsyncpa [#allocation14], 1
    %1149 = vsyncpa [#allocation17], 1
    %1150 = vsyncpa [#allocation6], 1
    %s1151 = scalar_lea.sflag [#allocation6], 1
    %1152 = vsyncpa %s1151, 1
    %1153 = vsyncpa [#allocation21], 1

</llo_original>
